<compile_context>
chip_gen: v6e
topology: v6e:2x2x1
jax: 0.10.0
libtpu: 0.0.40
codegen_flags: <defaults>
</compile_context>

<pallas_src>
import jax
import jax.numpy as jnp
from jax.experimental import pallas as pl
from jax.experimental.pallas import tpu as pltpu

B, T, NX, H1, H2, NY = 2, 8, 4, 32, 32, 1
NX_PAD = 8            # pad input features 4 -> 8 so the g1 projection K is sublane-aligned

# ---- packed weight-slab row offsets (all section starts are 8-row aligned) ----
R_WIH1 = 0            # (NX_PAD, 4*H1) rows 0..7 (rows NX..7 are zero)
R_WHH1 = 8            # (H1, 4*H1)     rows 8..39
R_B1   = 40           # (1, 4*H1)      row 40
R_WIH2 = 48           # (H1, 4*H2)     rows 48..79
R_WHH2 = 80           # (H2, 4*H2)     rows 80..111
R_B2   = 112          # (1, 4*H2)      row 112
R_WOUT = 120          # (1, H2)        row 120 (lanes 0..H2-1)
R_BOUT = 121          # (1, 1)         row 121 lane 0
SLAB_ROWS, SLAB_COLS = 128, 128


def _lstm_step(gx, h, c, whh_bf16, H):
    """One PyTorch-semantics LSTM cell step.

    gx = x@W_ih + (b_ih+b_hh) is precomputed (f32).  The recurrent matmul uses
    bf16 operands (MXU-native) with an f32 accumulator; everything else is f32.
    Activations are applied to the full 4H-wide gates vector (one sigmoid + one
    tanh EUP pass) and then sliced.  Gate order: i, f, g, o.
    """
    gates = gx + jnp.dot(h.astype(jnp.bfloat16), whh_bf16,
                         preferred_element_type=jnp.float32)          # (B, 4H) f32
    sig = jax.nn.sigmoid(gates)
    tnh = jnp.tanh(gates)
    i = sig[:, 0:H]
    f = sig[:, H:2 * H]
    g = tnh[:, 2 * H:3 * H]
    o = sig[:, 3 * H:4 * H]
    c_new = f * c + i * g
    h_new = o * jnp.tanh(c_new)
    return h_new, c_new


def basic_rnn_kernel(x_ref, slab_ref, out_ref):
    # x_ref: (T*B, NX_PAD) time-major, time already flipped for layer 1.
    x = x_ref[...]                                                    # (T*B, NX_PAD)

    # ---- Layer 1 input projection + bias: ONE matmul, off the serial chain ----
    wih1 = slab_ref[R_WIH1:R_WIH1 + NX_PAD, :]                        # (NX_PAD, 4*H1)
    b1   = slab_ref[R_B1:R_B1 + 1, :]                                 # (1, 4*H1)
    g1 = jnp.dot(x, wih1, preferred_element_type=jnp.float32) + b1    # (T*B, 4*H1)

    # ---- Layer 1: torch.flip(x,1) -> rnn1 -> torch.flip(out,1) ----
    # x arrives time-reversed, so we run forward over it and write h back to the
    # ORIGINAL time index.  T is static -> unrolled; states stay in vregs.
    whh1 = slab_ref[R_WHH1:R_WHH1 + H1, :].astype(jnp.bfloat16)       # (H1, 4*H1) bf16
    h = jnp.zeros((B, H1), jnp.float32)
    c = jnp.zeros((B, H1), jnp.float32)
    outs1 = [None] * T
    for s in range(T):
        h, c = _lstm_step(g1[s * B:(s + 1) * B, :], h, c, whh1, H1)
        outs1[T - 1 - s] = h                                          # un-flip
    out1 = jnp.stack(outs1, axis=0).reshape(T * B, H1)                # time-major, no-op layout

    # ---- Layer 2 input projection + bias: ONE matmul, off the serial chain ----
    wih2 = slab_ref[R_WIH2:R_WIH2 + H1, :]                            # (H1, 4*H2)
    b2   = slab_ref[R_B2:R_B2 + 1, :]                                 # (1, 4*H2)
    g2 = jnp.dot(out1, wih2, preferred_element_type=jnp.float32) + b2 # (T*B, 4*H2)

    # ---- Layer 2: forward in time ----
    whh2 = slab_ref[R_WHH2:R_WHH2 + H2, :].astype(jnp.bfloat16)       # (H2, 4*H2) bf16
    h = jnp.zeros((B, H2), jnp.float32)
    c = jnp.zeros((B, H2), jnp.float32)
    outs2 = [None] * T
    for t in range(T):
        h, c = _lstm_step(g2[t * B:(t + 1) * B, :], h, c, whh2, H2)
        outs2[t] = h
    out2 = jnp.stack(outs2, axis=0)                                   # (T, B, H2)

    # ---- Output MLP (ny=1): VPU multiply + lane reduce instead of an MXU pass ----
    wout = slab_ref[R_WOUT:R_WOUT + 1, 0:H2]                          # (1, H2)
    bout = slab_ref[R_BOUT:R_BOUT + 1, 0:1]                           # (1, 1)
    y = jnp.sum(out2 * wout.reshape(1, 1, H2), axis=-1, keepdims=True)  # (T, B, 1)
    out_ref[...] = y + bout.reshape(1, 1, 1)


def pack_params(params):
    """Pack all weights/biases into one lane-padded (128, 128) f32 slab."""
    wih1, whh1, b1, wih2, whh2, b2, wout, bout = params
    # The packing hard-codes 4*H = 128 = SLAB_COLS; guard against silent breakage.
    assert 4 * H1 == SLAB_COLS and 4 * H2 == SLAB_COLS, "slab layout assumes 4*H == 128"
    assert NX <= NX_PAD and R_BOUT < SLAB_ROWS
    slab = jnp.zeros((SLAB_ROWS, SLAB_COLS), jnp.float32)
    slab = slab.at[R_WIH1:R_WIH1 + NX, :].set(wih1)       # rows NX..NX_PAD-1 stay zero
    slab = slab.at[R_WHH1:R_WHH1 + H1, :].set(whh1)
    slab = slab.at[R_B1:R_B1 + 1, :].set(b1)
    slab = slab.at[R_WIH2:R_WIH2 + H1, :].set(wih2)
    slab = slab.at[R_WHH2:R_WHH2 + H2, :].set(whh2)
    slab = slab.at[R_B2:R_B2 + 1, :].set(b2)
    slab = slab.at[R_WOUT:R_WOUT + 1, 0:H2].set(wout.T)   # (H2,1) -> (1,H2)
    slab = slab.at[R_BOUT:R_BOUT + 1, 0:1].set(bout)
    return slab


def basic_rnn_forward(x, slab):
    """x: (B, T, NX) batch-first (PyTorch layout). Returns (B, T, NY)."""
    # Wrapper-side layout plumbing (off the serial chain):
    #   batch-first -> time-major, flip time (layer 1 runs over the flipped
    #   sequence), pad NX 4->8, flatten to a (T*B, NX_PAD) lane/sublane slab.
    x_tm = jnp.flip(jnp.transpose(x, (1, 0, 2)), axis=0)              # (T, B, NX) reversed time
    x_tm = jnp.pad(x_tm, ((0, 0), (0, 0), (0, NX_PAD - NX)))          # (T, B, NX_PAD)
    x_flat = x_tm.reshape(T * B, NX_PAD)

    vmem = pl.BlockSpec(memory_space=pltpu.MemorySpace.VMEM)
    y_tm = pl.pallas_call(
        basic_rnn_kernel,
        out_shape=jax.ShapeDtypeStruct((T, B, NY), jnp.float32),
        in_specs=[vmem, vmem],
        out_specs=vmem,
    )(x_flat, slab)
    return jnp.transpose(y_tm, (1, 0, 2))                             # (B, T, NY)


# ---------------- pure-JAX f32 reference (for correctness check) ----------------
def _ref_lstm_cell(gx, h, c, whh, H):
    gates = gx + h @ whh
    sig = jax.nn.sigmoid(gates)
    tnh = jnp.tanh(gates)
    i, f, g, o = sig[:, 0:H], sig[:, H:2 * H], tnh[:, 2 * H:3 * H], sig[:, 3 * H:4 * H]
    c_new = f * c + i * g
    return o * jnp.tanh(c_new), c_new


def _ref_lstm_layer(x_seq, wih, whh, b, H):
    def step(carry, x_t):
        h, c = carry
        h, c = _ref_lstm_cell(x_t @ wih + b, h, c, whh, H)
        return (h, c), h
    Bn = x_seq.shape[0]
    init = (jnp.zeros((Bn, H), jnp.float32), jnp.zeros((Bn, H), jnp.float32))
    _, outs = jax.lax.scan(step, init, jnp.swapaxes(x_seq, 0, 1))
    return jnp.swapaxes(outs, 0, 1)                                   # (B, T, H)


def reference_forward(x, params):
    wih1, whh1, b1, wih2, whh2, b2, wout, bout = params
    out1 = jnp.flip(_ref_lstm_layer(jnp.flip(x, 1), wih1, whh1, b1, H1), 1)
    out2 = _ref_lstm_layer(out1, wih2, whh2, b2, H2)
    return out2 @ wout + bout


def init_params(key):
    """Deterministic init mirroring PyTorch LSTM/Linear parameter shapes."""
    ks = jax.random.split(key, 9)
    k1 = 1.0 / jnp.sqrt(jnp.float32(H1))
    k2 = 1.0 / jnp.sqrt(jnp.float32(H2))
    u = lambda k, shp, lim: jax.random.uniform(k, shp, jnp.float32, -lim, lim)
    wih1 = u(ks[0], (NX, 4 * H1), k1)       # torch weight_ih_l0 (4H, nx), transposed
    whh1 = u(ks[1], (H1, 4 * H1), k1)       # torch weight_hh_l0 (4H, H), transposed
    b1 = u(ks[2], (1, 4 * H1), k1) + u(ks[3], (1, 4 * H1), k1)   # b_ih + b_hh
    wih2 = u(ks[4], (H1, 4 * H2), k2)
    whh2 = u(ks[5], (H2, 4 * H2), k2)
    b2 = u(ks[6], (1, 4 * H2), k2) + u(ks[7], (1, 4 * H2), k2)
    kw, kb = jax.random.split(ks[8])
    ko = 1.0 / jnp.sqrt(jnp.float32(H2))
    wout = u(kw, (H2, NY), ko)              # torch mlp_output.weight (ny, H2), transposed
    bout = u(kb, (1, NY), ko)
    return (wih1, whh1, b1, wih2, whh2, b2, wout, bout)


if __name__ == "__main__":
    key = jax.random.PRNGKey(0)
    kp, kx = jax.random.split(key)
    params = init_params(kp)
    x = jax.random.normal(kx, (B, T, NX), jnp.float32)   # inputs_main (B, T, nx)

    slab = pack_params(params)
    out = basic_rnn_forward(x, slab)
    out = jax.block_until_ready(out)

    ref = reference_forward(x, params)
    assert out.shape == (B, T, NY)
    # Tolerance relaxed vs. the f32 reference because the recurrent matmuls use
    # bf16 operands (f32 accumulation); all elementwise math remains f32.
    assert jnp.allclose(out, ref, atol=2e-2, rtol=2e-2), "mismatch vs reference"
    print("KERNEL_OK")
</pallas_src>

<mosaic_0001>
module attributes {stable_mosaic.version = 11 : i64} {
  func.func @basic_rnn_kernel(%arg0: memref<16x8xf32, #tpu.memory_space<vmem>>, %arg1: memref<128x128xf32, #tpu.memory_space<vmem>>, %arg2: memref<8x2x1xf32, #tpu.memory_space<vmem>>) attributes {dimension_semantics = [], scalar_prefetch = 0 : i64, scratch_operands = 0 : i64, tpu.core_type = #tpu.core_type<tc>} {
    %c0 = arith.constant 0 : index
    %c0_0 = arith.constant 0 : index
    %0 = vector.load %arg0[%c0, %c0_0] : memref<16x8xf32, #tpu.memory_space<vmem>>, vector<16x8xf32>
    %c0_1 = arith.constant 0 : index
    %c0_2 = arith.constant 0 : index
    %1 = vector.load %arg1[%c0_1, %c0_2] : memref<128x128xf32, #tpu.memory_space<vmem>>, vector<8x128xf32>
    %c40 = arith.constant 40 : index
    %c0_3 = arith.constant 0 : index
    %2 = vector.load %arg1[%c40, %c0_3] : memref<128x128xf32, #tpu.memory_space<vmem>>, vector<1x128xf32>
    %cst = arith.constant dense<0.000000e+00> : vector<16x128xf32>
    %3 = tpu.matmul %0, %1, %cst {dimension_numbers = #tpu.dot_dimension_numbers<[1], [0], [0], [1], [0, 0, 1, 1], [], []>} : vector<16x8xf32>, vector<8x128xf32>, vector<16x128xf32> -> vector<16x128xf32>
    %4 = vector.broadcast %2 : vector<1x128xf32> to vector<16x128xf32>
    %5 = arith.addf %3, %4 : vector<16x128xf32>
    %c8 = arith.constant 8 : index
    %c0_4 = arith.constant 0 : index
    %6 = vector.load %arg1[%c8, %c0_4] : memref<128x128xf32, #tpu.memory_space<vmem>>, vector<32x128xf32>
    %7 = arith.truncf %6 : vector<32x128xf32> to vector<32x128xbf16>
    %cst_5 = arith.constant 0.000000e+00 : f32
    %8 = vector.broadcast %cst_5 : f32 to vector<2x32xf32>
    %cst_6 = arith.constant 0.000000e+00 : f32
    %9 = vector.broadcast %cst_6 : f32 to vector<2x32xf32>
    %10 = vector.extract_strided_slice %5 {offsets = [0, 0], sizes = [2, 128], strides = [1, 1]} : vector<16x128xf32> to vector<2x128xf32>
    %11 = arith.truncf %8 : vector<2x32xf32> to vector<2x32xbf16>
    %cst_7 = arith.constant dense<0.000000e+00> : vector<2x128xf32>
    %12 = tpu.matmul %11, %7, %cst_7 {dimension_numbers = #tpu.dot_dimension_numbers<[1], [0], [0], [1], [0, 0, 1, 1], [], []>} : vector<2x32xbf16>, vector<32x128xbf16>, vector<2x128xf32> -> vector<2x128xf32>
    %13 = arith.addf %10, %12 : vector<2x128xf32>
    %14 = arith.negf %13 : vector<2x128xf32>
    %15 = math.exp %14 : vector<2x128xf32>
    %cst_8 = arith.constant 1.000000e+00 : f32
    %16 = vector.broadcast %cst_8 : f32 to vector<2x128xf32>
    %17 = arith.addf %16, %15 : vector<2x128xf32>
    %18 = arith.divf %16, %17 : vector<2x128xf32>
    %19 = math.tanh %13 : vector<2x128xf32>
    %20 = vector.extract_strided_slice %18 {offsets = [0, 0], sizes = [2, 32], strides = [1, 1]} : vector<2x128xf32> to vector<2x32xf32>
    %21 = vector.extract_strided_slice %18 {offsets = [0, 32], sizes = [2, 32], strides = [1, 1]} : vector<2x128xf32> to vector<2x32xf32>
    %22 = vector.extract_strided_slice %19 {offsets = [0, 64], sizes = [2, 32], strides = [1, 1]} : vector<2x128xf32> to vector<2x32xf32>
    %23 = vector.extract_strided_slice %18 {offsets = [0, 96], sizes = [2, 32], strides = [1, 1]} : vector<2x128xf32> to vector<2x32xf32>
    %24 = arith.mulf %21, %9 : vector<2x32xf32>
    %25 = arith.mulf %20, %22 : vector<2x32xf32>
    %26 = arith.addf %24, %25 : vector<2x32xf32>
    %27 = math.tanh %26 : vector<2x32xf32>
    %28 = arith.mulf %23, %27 : vector<2x32xf32>
    %29 = vector.extract_strided_slice %5 {offsets = [2, 0], sizes = [2, 128], strides = [1, 1]} : vector<16x128xf32> to vector<2x128xf32>
    %30 = arith.truncf %28 : vector<2x32xf32> to vector<2x32xbf16>
    %cst_9 = arith.constant dense<0.000000e+00> : vector<2x128xf32>
    %31 = tpu.matmul %30, %7, %cst_9 {dimension_numbers = #tpu.dot_dimension_numbers<[1], [0], [0], [1], [0, 0, 1, 1], [], []>} : vector<2x32xbf16>, vector<32x128xbf16>, vector<2x128xf32> -> vector<2x128xf32>
    %32 = arith.addf %29, %31 : vector<2x128xf32>
    %33 = arith.negf %32 : vector<2x128xf32>
    %34 = math.exp %33 : vector<2x128xf32>
    %cst_10 = arith.constant 1.000000e+00 : f32
    %35 = vector.broadcast %cst_10 : f32 to vector<2x128xf32>
    %36 = arith.addf %35, %34 : vector<2x128xf32>
    %37 = arith.divf %35, %36 : vector<2x128xf32>
    %38 = math.tanh %32 : vector<2x128xf32>
    %39 = vector.extract_strided_slice %37 {offsets = [0, 0], sizes = [2, 32], strides = [1, 1]} : vector<2x128xf32> to vector<2x32xf32>
    %40 = vector.extract_strided_slice %37 {offsets = [0, 32], sizes = [2, 32], strides = [1, 1]} : vector<2x128xf32> to vector<2x32xf32>
    %41 = vector.extract_strided_slice %38 {offsets = [0, 64], sizes = [2, 32], strides = [1, 1]} : vector<2x128xf32> to vector<2x32xf32>
    %42 = vector.extract_strided_slice %37 {offsets = [0, 96], sizes = [2, 32], strides = [1, 1]} : vector<2x128xf32> to vector<2x32xf32>
    %43 = arith.mulf %40, %26 : vector<2x32xf32>
    %44 = arith.mulf %39, %41 : vector<2x32xf32>
    %45 = arith.addf %43, %44 : vector<2x32xf32>
    %46 = math.tanh %45 : vector<2x32xf32>
    %47 = arith.mulf %42, %46 : vector<2x32xf32>
    %48 = vector.extract_strided_slice %5 {offsets = [4, 0], sizes = [2, 128], strides = [1, 1]} : vector<16x128xf32> to vector<2x128xf32>
    %49 = arith.truncf %47 : vector<2x32xf32> to vector<2x32xbf16>
    %cst_11 = arith.constant dense<0.000000e+00> : vector<2x128xf32>
    %50 = tpu.matmul %49, %7, %cst_11 {dimension_numbers = #tpu.dot_dimension_numbers<[1], [0], [0], [1], [0, 0, 1, 1], [], []>} : vector<2x32xbf16>, vector<32x128xbf16>, vector<2x128xf32> -> vector<2x128xf32>
    %51 = arith.addf %48, %50 : vector<2x128xf32>
    %52 = arith.negf %51 : vector<2x128xf32>
    %53 = math.exp %52 : vector<2x128xf32>
    %cst_12 = arith.constant 1.000000e+00 : f32
    %54 = vector.broadcast %cst_12 : f32 to vector<2x128xf32>
    %55 = arith.addf %54, %53 : vector<2x128xf32>
    %56 = arith.divf %54, %55 : vector<2x128xf32>
    %57 = math.tanh %51 : vector<2x128xf32>
    %58 = vector.extract_strided_slice %56 {offsets = [0, 0], sizes = [2, 32], strides = [1, 1]} : vector<2x128xf32> to vector<2x32xf32>
    %59 = vector.extract_strided_slice %56 {offsets = [0, 32], sizes = [2, 32], strides = [1, 1]} : vector<2x128xf32> to vector<2x32xf32>
    %60 = vector.extract_strided_slice %57 {offsets = [0, 64], sizes = [2, 32], strides = [1, 1]} : vector<2x128xf32> to vector<2x32xf32>
    %61 = vector.extract_strided_slice %56 {offsets = [0, 96], sizes = [2, 32], strides = [1, 1]} : vector<2x128xf32> to vector<2x32xf32>
    %62 = arith.mulf %59, %45 : vector<2x32xf32>
    %63 = arith.mulf %58, %60 : vector<2x32xf32>
    %64 = arith.addf %62, %63 : vector<2x32xf32>
    %65 = math.tanh %64 : vector<2x32xf32>
    %66 = arith.mulf %61, %65 : vector<2x32xf32>
    %67 = vector.extract_strided_slice %5 {offsets = [6, 0], sizes = [2, 128], strides = [1, 1]} : vector<16x128xf32> to vector<2x128xf32>
    %68 = arith.truncf %66 : vector<2x32xf32> to vector<2x32xbf16>
    %cst_13 = arith.constant dense<0.000000e+00> : vector<2x128xf32>
    %69 = tpu.matmul %68, %7, %cst_13 {dimension_numbers = #tpu.dot_dimension_numbers<[1], [0], [0], [1], [0, 0, 1, 1], [], []>} : vector<2x32xbf16>, vector<32x128xbf16>, vector<2x128xf32> -> vector<2x128xf32>
    %70 = arith.addf %67, %69 : vector<2x128xf32>
    %71 = arith.negf %70 : vector<2x128xf32>
    %72 = math.exp %71 : vector<2x128xf32>
    %cst_14 = arith.constant 1.000000e+00 : f32
    %73 = vector.broadcast %cst_14 : f32 to vector<2x128xf32>
    %74 = arith.addf %73, %72 : vector<2x128xf32>
    %75 = arith.divf %73, %74 : vector<2x128xf32>
    %76 = math.tanh %70 : vector<2x128xf32>
    %77 = vector.extract_strided_slice %75 {offsets = [0, 0], sizes = [2, 32], strides = [1, 1]} : vector<2x128xf32> to vector<2x32xf32>
    %78 = vector.extract_strided_slice %75 {offsets = [0, 32], sizes = [2, 32], strides = [1, 1]} : vector<2x128xf32> to vector<2x32xf32>
    %79 = vector.extract_strided_slice %76 {offsets = [0, 64], sizes = [2, 32], strides = [1, 1]} : vector<2x128xf32> to vector<2x32xf32>
    %80 = vector.extract_strided_slice %75 {offsets = [0, 96], sizes = [2, 32], strides = [1, 1]} : vector<2x128xf32> to vector<2x32xf32>
    %81 = arith.mulf %78, %64 : vector<2x32xf32>
    %82 = arith.mulf %77, %79 : vector<2x32xf32>
    %83 = arith.addf %81, %82 : vector<2x32xf32>
    %84 = math.tanh %83 : vector<2x32xf32>
    %85 = arith.mulf %80, %84 : vector<2x32xf32>
    %86 = vector.extract_strided_slice %5 {offsets = [8, 0], sizes = [2, 128], strides = [1, 1]} : vector<16x128xf32> to vector<2x128xf32>
    %87 = arith.truncf %85 : vector<2x32xf32> to vector<2x32xbf16>
    %cst_15 = arith.constant dense<0.000000e+00> : vector<2x128xf32>
    %88 = tpu.matmul %87, %7, %cst_15 {dimension_numbers = #tpu.dot_dimension_numbers<[1], [0], [0], [1], [0, 0, 1, 1], [], []>} : vector<2x32xbf16>, vector<32x128xbf16>, vector<2x128xf32> -> vector<2x128xf32>
    %89 = arith.addf %86, %88 : vector<2x128xf32>
    %90 = arith.negf %89 : vector<2x128xf32>
    %91 = math.exp %90 : vector<2x128xf32>
    %cst_16 = arith.constant 1.000000e+00 : f32
    %92 = vector.broadcast %cst_16 : f32 to vector<2x128xf32>
    %93 = arith.addf %92, %91 : vector<2x128xf32>
    %94 = arith.divf %92, %93 : vector<2x128xf32>
    %95 = math.tanh %89 : vector<2x128xf32>
    %96 = vector.extract_strided_slice %94 {offsets = [0, 0], sizes = [2, 32], strides = [1, 1]} : vector<2x128xf32> to vector<2x32xf32>
    %97 = vector.extract_strided_slice %94 {offsets = [0, 32], sizes = [2, 32], strides = [1, 1]} : vector<2x128xf32> to vector<2x32xf32>
    %98 = vector.extract_strided_slice %95 {offsets = [0, 64], sizes = [2, 32], strides = [1, 1]} : vector<2x128xf32> to vector<2x32xf32>
    %99 = vector.extract_strided_slice %94 {offsets = [0, 96], sizes = [2, 32], strides = [1, 1]} : vector<2x128xf32> to vector<2x32xf32>
    %100 = arith.mulf %97, %83 : vector<2x32xf32>
    %101 = arith.mulf %96, %98 : vector<2x32xf32>
    %102 = arith.addf %100, %101 : vector<2x32xf32>
    %103 = math.tanh %102 : vector<2x32xf32>
    %104 = arith.mulf %99, %103 : vector<2x32xf32>
    %105 = vector.extract_strided_slice %5 {offsets = [10, 0], sizes = [2, 128], strides = [1, 1]} : vector<16x128xf32> to vector<2x128xf32>
    %106 = arith.truncf %104 : vector<2x32xf32> to vector<2x32xbf16>
    %cst_17 = arith.constant dense<0.000000e+00> : vector<2x128xf32>
    %107 = tpu.matmul %106, %7, %cst_17 {dimension_numbers = #tpu.dot_dimension_numbers<[1], [0], [0], [1], [0, 0, 1, 1], [], []>} : vector<2x32xbf16>, vector<32x128xbf16>, vector<2x128xf32> -> vector<2x128xf32>
    %108 = arith.addf %105, %107 : vector<2x128xf32>
    %109 = arith.negf %108 : vector<2x128xf32>
    %110 = math.exp %109 : vector<2x128xf32>
    %cst_18 = arith.constant 1.000000e+00 : f32
    %111 = vector.broadcast %cst_18 : f32 to vector<2x128xf32>
    %112 = arith.addf %111, %110 : vector<2x128xf32>
    %113 = arith.divf %111, %112 : vector<2x128xf32>
    %114 = math.tanh %108 : vector<2x128xf32>
    %115 = vector.extract_strided_slice %113 {offsets = [0, 0], sizes = [2, 32], strides = [1, 1]} : vector<2x128xf32> to vector<2x32xf32>
    %116 = vector.extract_strided_slice %113 {offsets = [0, 32], sizes = [2, 32], strides = [1, 1]} : vector<2x128xf32> to vector<2x32xf32>
    %117 = vector.extract_strided_slice %114 {offsets = [0, 64], sizes = [2, 32], strides = [1, 1]} : vector<2x128xf32> to vector<2x32xf32>
    %118 = vector.extract_strided_slice %113 {offsets = [0, 96], sizes = [2, 32], strides = [1, 1]} : vector<2x128xf32> to vector<2x32xf32>
    %119 = arith.mulf %116, %102 : vector<2x32xf32>
    %120 = arith.mulf %115, %117 : vector<2x32xf32>
    %121 = arith.addf %119, %120 : vector<2x32xf32>
    %122 = math.tanh %121 : vector<2x32xf32>
    %123 = arith.mulf %118, %122 : vector<2x32xf32>
    %124 = vector.extract_strided_slice %5 {offsets = [12, 0], sizes = [2, 128], strides = [1, 1]} : vector<16x128xf32> to vector<2x128xf32>
    %125 = arith.truncf %123 : vector<2x32xf32> to vector<2x32xbf16>
    %cst_19 = arith.constant dense<0.000000e+00> : vector<2x128xf32>
    %126 = tpu.matmul %125, %7, %cst_19 {dimension_numbers = #tpu.dot_dimension_numbers<[1], [0], [0], [1], [0, 0, 1, 1], [], []>} : vector<2x32xbf16>, vector<32x128xbf16>, vector<2x128xf32> -> vector<2x128xf32>
    %127 = arith.addf %124, %126 : vector<2x128xf32>
    %128 = arith.negf %127 : vector<2x128xf32>
    %129 = math.exp %128 : vector<2x128xf32>
    %cst_20 = arith.constant 1.000000e+00 : f32
    %130 = vector.broadcast %cst_20 : f32 to vector<2x128xf32>
    %131 = arith.addf %130, %129 : vector<2x128xf32>
    %132 = arith.divf %130, %131 : vector<2x128xf32>
    %133 = math.tanh %127 : vector<2x128xf32>
    %134 = vector.extract_strided_slice %132 {offsets = [0, 0], sizes = [2, 32], strides = [1, 1]} : vector<2x128xf32> to vector<2x32xf32>
    %135 = vector.extract_strided_slice %132 {offsets = [0, 32], sizes = [2, 32], strides = [1, 1]} : vector<2x128xf32> to vector<2x32xf32>
    %136 = vector.extract_strided_slice %133 {offsets = [0, 64], sizes = [2, 32], strides = [1, 1]} : vector<2x128xf32> to vector<2x32xf32>
    %137 = vector.extract_strided_slice %132 {offsets = [0, 96], sizes = [2, 32], strides = [1, 1]} : vector<2x128xf32> to vector<2x32xf32>
    %138 = arith.mulf %135, %121 : vector<2x32xf32>
    %139 = arith.mulf %134, %136 : vector<2x32xf32>
    %140 = arith.addf %138, %139 : vector<2x32xf32>
    %141 = math.tanh %140 : vector<2x32xf32>
    %142 = arith.mulf %137, %141 : vector<2x32xf32>
    %143 = vector.extract_strided_slice %5 {offsets = [14, 0], sizes = [2, 128], strides = [1, 1]} : vector<16x128xf32> to vector<2x128xf32>
    %144 = arith.truncf %142 : vector<2x32xf32> to vector<2x32xbf16>
    %cst_21 = arith.constant dense<0.000000e+00> : vector<2x128xf32>
    %145 = tpu.matmul %144, %7, %cst_21 {dimension_numbers = #tpu.dot_dimension_numbers<[1], [0], [0], [1], [0, 0, 1, 1], [], []>} : vector<2x32xbf16>, vector<32x128xbf16>, vector<2x128xf32> -> vector<2x128xf32>
    %146 = arith.addf %143, %145 : vector<2x128xf32>
    %147 = arith.negf %146 : vector<2x128xf32>
    %148 = math.exp %147 : vector<2x128xf32>
    %cst_22 = arith.constant 1.000000e+00 : f32
    %149 = vector.broadcast %cst_22 : f32 to vector<2x128xf32>
    %150 = arith.addf %149, %148 : vector<2x128xf32>
    %151 = arith.divf %149, %150 : vector<2x128xf32>
    %152 = math.tanh %146 : vector<2x128xf32>
    %153 = vector.extract_strided_slice %151 {offsets = [0, 0], sizes = [2, 32], strides = [1, 1]} : vector<2x128xf32> to vector<2x32xf32>
    %154 = vector.extract_strided_slice %151 {offsets = [0, 32], sizes = [2, 32], strides = [1, 1]} : vector<2x128xf32> to vector<2x32xf32>
    %155 = vector.extract_strided_slice %152 {offsets = [0, 64], sizes = [2, 32], strides = [1, 1]} : vector<2x128xf32> to vector<2x32xf32>
    %156 = vector.extract_strided_slice %151 {offsets = [0, 96], sizes = [2, 32], strides = [1, 1]} : vector<2x128xf32> to vector<2x32xf32>
    %157 = arith.mulf %154, %140 : vector<2x32xf32>
    %158 = arith.mulf %153, %155 : vector<2x32xf32>
    %159 = arith.addf %157, %158 : vector<2x32xf32>
    %160 = math.tanh %159 : vector<2x32xf32>
    %161 = arith.mulf %156, %160 : vector<2x32xf32>
    %162 = vector.shape_cast %161 : vector<2x32xf32> to vector<1x2x32xf32>
    %163 = vector.shape_cast %142 : vector<2x32xf32> to vector<1x2x32xf32>
    %164 = vector.shape_cast %123 : vector<2x32xf32> to vector<1x2x32xf32>
    %165 = vector.shape_cast %104 : vector<2x32xf32> to vector<1x2x32xf32>
    %166 = vector.shape_cast %85 : vector<2x32xf32> to vector<1x2x32xf32>
    %167 = vector.shape_cast %66 : vector<2x32xf32> to vector<1x2x32xf32>
    %168 = vector.shape_cast %47 : vector<2x32xf32> to vector<1x2x32xf32>
    %169 = vector.shape_cast %28 : vector<2x32xf32> to vector<1x2x32xf32>
    %170 = tpu.concatenate %162, %163, %164, %165, %166, %167, %168, %169 in 0 : vector<1x2x32xf32>, vector<1x2x32xf32>, vector<1x2x32xf32>, vector<1x2x32xf32>, vector<1x2x32xf32>, vector<1x2x32xf32>, vector<1x2x32xf32>, vector<1x2x32xf32> -> vector<8x2x32xf32>
    %171 = vector.shape_cast %170 : vector<8x2x32xf32> to vector<16x32xf32>
    %c48 = arith.constant 48 : index
    %c0_23 = arith.constant 0 : index
    %172 = vector.load %arg1[%c48, %c0_23] : memref<128x128xf32, #tpu.memory_space<vmem>>, vector<32x128xf32>
    %c112 = arith.constant 112 : index
    %c0_24 = arith.constant 0 : index
    %173 = vector.load %arg1[%c112, %c0_24] : memref<128x128xf32, #tpu.memory_space<vmem>>, vector<1x128xf32>
    %cst_25 = arith.constant dense<0.000000e+00> : vector<16x128xf32>
    %174 = tpu.matmul %171, %172, %cst_25 {dimension_numbers = #tpu.dot_dimension_numbers<[1], [0], [0], [1], [0, 0, 1, 1], [], []>} : vector<16x32xf32>, vector<32x128xf32>, vector<16x128xf32> -> vector<16x128xf32>
    %175 = vector.broadcast %173 : vector<1x128xf32> to vector<16x128xf32>
    %176 = arith.addf %174, %175 : vector<16x128xf32>
    %c80 = arith.constant 80 : index
    %c0_26 = arith.constant 0 : index
    %177 = vector.load %arg1[%c80, %c0_26] : memref<128x128xf32, #tpu.memory_space<vmem>>, vector<32x128xf32>
    %178 = arith.truncf %177 : vector<32x128xf32> to vector<32x128xbf16>
    %cst_27 = arith.constant 0.000000e+00 : f32
    %179 = vector.broadcast %cst_27 : f32 to vector<2x32xf32>
    %cst_28 = arith.constant 0.000000e+00 : f32
    %180 = vector.broadcast %cst_28 : f32 to vector<2x32xf32>
    %181 = vector.extract_strided_slice %176 {offsets = [0, 0], sizes = [2, 128], strides = [1, 1]} : vector<16x128xf32> to vector<2x128xf32>
    %182 = arith.truncf %179 : vector<2x32xf32> to vector<2x32xbf16>
    %cst_29 = arith.constant dense<0.000000e+00> : vector<2x128xf32>
    %183 = tpu.matmul %182, %178, %cst_29 {dimension_numbers = #tpu.dot_dimension_numbers<[1], [0], [0], [1], [0, 0, 1, 1], [], []>} : vector<2x32xbf16>, vector<32x128xbf16>, vector<2x128xf32> -> vector<2x128xf32>
    %184 = arith.addf %181, %183 : vector<2x128xf32>
    %185 = arith.negf %184 : vector<2x128xf32>
    %186 = math.exp %185 : vector<2x128xf32>
    %cst_30 = arith.constant 1.000000e+00 : f32
    %187 = vector.broadcast %cst_30 : f32 to vector<2x128xf32>
    %188 = arith.addf %187, %186 : vector<2x128xf32>
    %189 = arith.divf %187, %188 : vector<2x128xf32>
    %190 = math.tanh %184 : vector<2x128xf32>
    %191 = vector.extract_strided_slice %189 {offsets = [0, 0], sizes = [2, 32], strides = [1, 1]} : vector<2x128xf32> to vector<2x32xf32>
    %192 = vector.extract_strided_slice %189 {offsets = [0, 32], sizes = [2, 32], strides = [1, 1]} : vector<2x128xf32> to vector<2x32xf32>
    %193 = vector.extract_strided_slice %190 {offsets = [0, 64], sizes = [2, 32], strides = [1, 1]} : vector<2x128xf32> to vector<2x32xf32>
    %194 = vector.extract_strided_slice %189 {offsets = [0, 96], sizes = [2, 32], strides = [1, 1]} : vector<2x128xf32> to vector<2x32xf32>
    %195 = arith.mulf %192, %180 : vector<2x32xf32>
    %196 = arith.mulf %191, %193 : vector<2x32xf32>
    %197 = arith.addf %195, %196 : vector<2x32xf32>
    %198 = math.tanh %197 : vector<2x32xf32>
    %199 = arith.mulf %194, %198 : vector<2x32xf32>
    %200 = vector.extract_strided_slice %176 {offsets = [2, 0], sizes = [2, 128], strides = [1, 1]} : vector<16x128xf32> to vector<2x128xf32>
    %201 = arith.truncf %199 : vector<2x32xf32> to vector<2x32xbf16>
    %cst_31 = arith.constant dense<0.000000e+00> : vector<2x128xf32>
    %202 = tpu.matmul %201, %178, %cst_31 {dimension_numbers = #tpu.dot_dimension_numbers<[1], [0], [0], [1], [0, 0, 1, 1], [], []>} : vector<2x32xbf16>, vector<32x128xbf16>, vector<2x128xf32> -> vector<2x128xf32>
    %203 = arith.addf %200, %202 : vector<2x128xf32>
    %204 = arith.negf %203 : vector<2x128xf32>
    %205 = math.exp %204 : vector<2x128xf32>
    %cst_32 = arith.constant 1.000000e+00 : f32
    %206 = vector.broadcast %cst_32 : f32 to vector<2x128xf32>
    %207 = arith.addf %206, %205 : vector<2x128xf32>
    %208 = arith.divf %206, %207 : vector<2x128xf32>
    %209 = math.tanh %203 : vector<2x128xf32>
    %210 = vector.extract_strided_slice %208 {offsets = [0, 0], sizes = [2, 32], strides = [1, 1]} : vector<2x128xf32> to vector<2x32xf32>
    %211 = vector.extract_strided_slice %208 {offsets = [0, 32], sizes = [2, 32], strides = [1, 1]} : vector<2x128xf32> to vector<2x32xf32>
    %212 = vector.extract_strided_slice %209 {offsets = [0, 64], sizes = [2, 32], strides = [1, 1]} : vector<2x128xf32> to vector<2x32xf32>
    %213 = vector.extract_strided_slice %208 {offsets = [0, 96], sizes = [2, 32], strides = [1, 1]} : vector<2x128xf32> to vector<2x32xf32>
    %214 = arith.mulf %211, %197 : vector<2x32xf32>
    %215 = arith.mulf %210, %212 : vector<2x32xf32>
    %216 = arith.addf %214, %215 : vector<2x32xf32>
    %217 = math.tanh %216 : vector<2x32xf32>
    %218 = arith.mulf %213, %217 : vector<2x32xf32>
    %219 = vector.extract_strided_slice %176 {offsets = [4, 0], sizes = [2, 128], strides = [1, 1]} : vector<16x128xf32> to vector<2x128xf32>
    %220 = arith.truncf %218 : vector<2x32xf32> to vector<2x32xbf16>
    %cst_33 = arith.constant dense<0.000000e+00> : vector<2x128xf32>
    %221 = tpu.matmul %220, %178, %cst_33 {dimension_numbers = #tpu.dot_dimension_numbers<[1], [0], [0], [1], [0, 0, 1, 1], [], []>} : vector<2x32xbf16>, vector<32x128xbf16>, vector<2x128xf32> -> vector<2x128xf32>
    %222 = arith.addf %219, %221 : vector<2x128xf32>
    %223 = arith.negf %222 : vector<2x128xf32>
    %224 = math.exp %223 : vector<2x128xf32>
    %cst_34 = arith.constant 1.000000e+00 : f32
    %225 = vector.broadcast %cst_34 : f32 to vector<2x128xf32>
    %226 = arith.addf %225, %224 : vector<2x128xf32>
    %227 = arith.divf %225, %226 : vector<2x128xf32>
    %228 = math.tanh %222 : vector<2x128xf32>
    %229 = vector.extract_strided_slice %227 {offsets = [0, 0], sizes = [2, 32], strides = [1, 1]} : vector<2x128xf32> to vector<2x32xf32>
    %230 = vector.extract_strided_slice %227 {offsets = [0, 32], sizes = [2, 32], strides = [1, 1]} : vector<2x128xf32> to vector<2x32xf32>
    %231 = vector.extract_strided_slice %228 {offsets = [0, 64], sizes = [2, 32], strides = [1, 1]} : vector<2x128xf32> to vector<2x32xf32>
    %232 = vector.extract_strided_slice %227 {offsets = [0, 96], sizes = [2, 32], strides = [1, 1]} : vector<2x128xf32> to vector<2x32xf32>
    %233 = arith.mulf %230, %216 : vector<2x32xf32>
    %234 = arith.mulf %229, %231 : vector<2x32xf32>
    %235 = arith.addf %233, %234 : vector<2x32xf32>
    %236 = math.tanh %235 : vector<2x32xf32>
    %237 = arith.mulf %232, %236 : vector<2x32xf32>
    %238 = vector.extract_strided_slice %176 {offsets = [6, 0], sizes = [2, 128], strides = [1, 1]} : vector<16x128xf32> to vector<2x128xf32>
    %239 = arith.truncf %237 : vector<2x32xf32> to vector<2x32xbf16>
    %cst_35 = arith.constant dense<0.000000e+00> : vector<2x128xf32>
    %240 = tpu.matmul %239, %178, %cst_35 {dimension_numbers = #tpu.dot_dimension_numbers<[1], [0], [0], [1], [0, 0, 1, 1], [], []>} : vector<2x32xbf16>, vector<32x128xbf16>, vector<2x128xf32> -> vector<2x128xf32>
    %241 = arith.addf %238, %240 : vector<2x128xf32>
    %242 = arith.negf %241 : vector<2x128xf32>
    %243 = math.exp %242 : vector<2x128xf32>
    %cst_36 = arith.constant 1.000000e+00 : f32
    %244 = vector.broadcast %cst_36 : f32 to vector<2x128xf32>
    %245 = arith.addf %244, %243 : vector<2x128xf32>
    %246 = arith.divf %244, %245 : vector<2x128xf32>
    %247 = math.tanh %241 : vector<2x128xf32>
    %248 = vector.extract_strided_slice %246 {offsets = [0, 0], sizes = [2, 32], strides = [1, 1]} : vector<2x128xf32> to vector<2x32xf32>
    %249 = vector.extract_strided_slice %246 {offsets = [0, 32], sizes = [2, 32], strides = [1, 1]} : vector<2x128xf32> to vector<2x32xf32>
    %250 = vector.extract_strided_slice %247 {offsets = [0, 64], sizes = [2, 32], strides = [1, 1]} : vector<2x128xf32> to vector<2x32xf32>
    %251 = vector.extract_strided_slice %246 {offsets = [0, 96], sizes = [2, 32], strides = [1, 1]} : vector<2x128xf32> to vector<2x32xf32>
    %252 = arith.mulf %249, %235 : vector<2x32xf32>
    %253 = arith.mulf %248, %250 : vector<2x32xf32>
    %254 = arith.addf %252, %253 : vector<2x32xf32>
    %255 = math.tanh %254 : vector<2x32xf32>
    %256 = arith.mulf %251, %255 : vector<2x32xf32>
    %257 = vector.extract_strided_slice %176 {offsets = [8, 0], sizes = [2, 128], strides = [1, 1]} : vector<16x128xf32> to vector<2x128xf32>
    %258 = arith.truncf %256 : vector<2x32xf32> to vector<2x32xbf16>
    %cst_37 = arith.constant dense<0.000000e+00> : vector<2x128xf32>
    %259 = tpu.matmul %258, %178, %cst_37 {dimension_numbers = #tpu.dot_dimension_numbers<[1], [0], [0], [1], [0, 0, 1, 1], [], []>} : vector<2x32xbf16>, vector<32x128xbf16>, vector<2x128xf32> -> vector<2x128xf32>
    %260 = arith.addf %257, %259 : vector<2x128xf32>
    %261 = arith.negf %260 : vector<2x128xf32>
    %262 = math.exp %261 : vector<2x128xf32>
    %cst_38 = arith.constant 1.000000e+00 : f32
    %263 = vector.broadcast %cst_38 : f32 to vector<2x128xf32>
    %264 = arith.addf %263, %262 : vector<2x128xf32>
    %265 = arith.divf %263, %264 : vector<2x128xf32>
    %266 = math.tanh %260 : vector<2x128xf32>
    %267 = vector.extract_strided_slice %265 {offsets = [0, 0], sizes = [2, 32], strides = [1, 1]} : vector<2x128xf32> to vector<2x32xf32>
    %268 = vector.extract_strided_slice %265 {offsets = [0, 32], sizes = [2, 32], strides = [1, 1]} : vector<2x128xf32> to vector<2x32xf32>
    %269 = vector.extract_strided_slice %266 {offsets = [0, 64], sizes = [2, 32], strides = [1, 1]} : vector<2x128xf32> to vector<2x32xf32>
    %270 = vector.extract_strided_slice %265 {offsets = [0, 96], sizes = [2, 32], strides = [1, 1]} : vector<2x128xf32> to vector<2x32xf32>
    %271 = arith.mulf %268, %254 : vector<2x32xf32>
    %272 = arith.mulf %267, %269 : vector<2x32xf32>
    %273 = arith.addf %271, %272 : vector<2x32xf32>
    %274 = math.tanh %273 : vector<2x32xf32>
    %275 = arith.mulf %270, %274 : vector<2x32xf32>
    %276 = vector.extract_strided_slice %176 {offsets = [10, 0], sizes = [2, 128], strides = [1, 1]} : vector<16x128xf32> to vector<2x128xf32>
    %277 = arith.truncf %275 : vector<2x32xf32> to vector<2x32xbf16>
    %cst_39 = arith.constant dense<0.000000e+00> : vector<2x128xf32>
    %278 = tpu.matmul %277, %178, %cst_39 {dimension_numbers = #tpu.dot_dimension_numbers<[1], [0], [0], [1], [0, 0, 1, 1], [], []>} : vector<2x32xbf16>, vector<32x128xbf16>, vector<2x128xf32> -> vector<2x128xf32>
    %279 = arith.addf %276, %278 : vector<2x128xf32>
    %280 = arith.negf %279 : vector<2x128xf32>
    %281 = math.exp %280 : vector<2x128xf32>
    %cst_40 = arith.constant 1.000000e+00 : f32
    %282 = vector.broadcast %cst_40 : f32 to vector<2x128xf32>
    %283 = arith.addf %282, %281 : vector<2x128xf32>
    %284 = arith.divf %282, %283 : vector<2x128xf32>
    %285 = math.tanh %279 : vector<2x128xf32>
    %286 = vector.extract_strided_slice %284 {offsets = [0, 0], sizes = [2, 32], strides = [1, 1]} : vector<2x128xf32> to vector<2x32xf32>
    %287 = vector.extract_strided_slice %284 {offsets = [0, 32], sizes = [2, 32], strides = [1, 1]} : vector<2x128xf32> to vector<2x32xf32>
    %288 = vector.extract_strided_slice %285 {offsets = [0, 64], sizes = [2, 32], strides = [1, 1]} : vector<2x128xf32> to vector<2x32xf32>
    %289 = vector.extract_strided_slice %284 {offsets = [0, 96], sizes = [2, 32], strides = [1, 1]} : vector<2x128xf32> to vector<2x32xf32>
    %290 = arith.mulf %287, %273 : vector<2x32xf32>
    %291 = arith.mulf %286, %288 : vector<2x32xf32>
    %292 = arith.addf %290, %291 : vector<2x32xf32>
    %293 = math.tanh %292 : vector<2x32xf32>
    %294 = arith.mulf %289, %293 : vector<2x32xf32>
    %295 = vector.extract_strided_slice %176 {offsets = [12, 0], sizes = [2, 128], strides = [1, 1]} : vector<16x128xf32> to vector<2x128xf32>
    %296 = arith.truncf %294 : vector<2x32xf32> to vector<2x32xbf16>
    %cst_41 = arith.constant dense<0.000000e+00> : vector<2x128xf32>
    %297 = tpu.matmul %296, %178, %cst_41 {dimension_numbers = #tpu.dot_dimension_numbers<[1], [0], [0], [1], [0, 0, 1, 1], [], []>} : vector<2x32xbf16>, vector<32x128xbf16>, vector<2x128xf32> -> vector<2x128xf32>
    %298 = arith.addf %295, %297 : vector<2x128xf32>
    %299 = arith.negf %298 : vector<2x128xf32>
    %300 = math.exp %299 : vector<2x128xf32>
    %cst_42 = arith.constant 1.000000e+00 : f32
    %301 = vector.broadcast %cst_42 : f32 to vector<2x128xf32>
    %302 = arith.addf %301, %300 : vector<2x128xf32>
    %303 = arith.divf %301, %302 : vector<2x128xf32>
    %304 = math.tanh %298 : vector<2x128xf32>
    %305 = vector.extract_strided_slice %303 {offsets = [0, 0], sizes = [2, 32], strides = [1, 1]} : vector<2x128xf32> to vector<2x32xf32>
    %306 = vector.extract_strided_slice %303 {offsets = [0, 32], sizes = [2, 32], strides = [1, 1]} : vector<2x128xf32> to vector<2x32xf32>
    %307 = vector.extract_strided_slice %304 {offsets = [0, 64], sizes = [2, 32], strides = [1, 1]} : vector<2x128xf32> to vector<2x32xf32>
    %308 = vector.extract_strided_slice %303 {offsets = [0, 96], sizes = [2, 32], strides = [1, 1]} : vector<2x128xf32> to vector<2x32xf32>
    %309 = arith.mulf %306, %292 : vector<2x32xf32>
    %310 = arith.mulf %305, %307 : vector<2x32xf32>
    %311 = arith.addf %309, %310 : vector<2x32xf32>
    %312 = math.tanh %311 : vector<2x32xf32>
    %313 = arith.mulf %308, %312 : vector<2x32xf32>
    %314 = vector.extract_strided_slice %176 {offsets = [14, 0], sizes = [2, 128], strides = [1, 1]} : vector<16x128xf32> to vector<2x128xf32>
    %315 = arith.truncf %313 : vector<2x32xf32> to vector<2x32xbf16>
    %cst_43 = arith.constant dense<0.000000e+00> : vector<2x128xf32>
    %316 = tpu.matmul %315, %178, %cst_43 {dimension_numbers = #tpu.dot_dimension_numbers<[1], [0], [0], [1], [0, 0, 1, 1], [], []>} : vector<2x32xbf16>, vector<32x128xbf16>, vector<2x128xf32> -> vector<2x128xf32>
    %317 = arith.addf %314, %316 : vector<2x128xf32>
    %318 = arith.negf %317 : vector<2x128xf32>
    %319 = math.exp %318 : vector<2x128xf32>
    %cst_44 = arith.constant 1.000000e+00 : f32
    %320 = vector.broadcast %cst_44 : f32 to vector<2x128xf32>
    %321 = arith.addf %320, %319 : vector<2x128xf32>
    %322 = arith.divf %320, %321 : vector<2x128xf32>
    %323 = math.tanh %317 : vector<2x128xf32>
    %324 = vector.extract_strided_slice %322 {offsets = [0, 0], sizes = [2, 32], strides = [1, 1]} : vector<2x128xf32> to vector<2x32xf32>
    %325 = vector.extract_strided_slice %322 {offsets = [0, 32], sizes = [2, 32], strides = [1, 1]} : vector<2x128xf32> to vector<2x32xf32>
    %326 = vector.extract_strided_slice %323 {offsets = [0, 64], sizes = [2, 32], strides = [1, 1]} : vector<2x128xf32> to vector<2x32xf32>
    %327 = vector.extract_strided_slice %322 {offsets = [0, 96], sizes = [2, 32], strides = [1, 1]} : vector<2x128xf32> to vector<2x32xf32>
    %328 = arith.mulf %325, %311 : vector<2x32xf32>
    %329 = arith.mulf %324, %326 : vector<2x32xf32>
    %330 = arith.addf %328, %329 : vector<2x32xf32>
    %331 = math.tanh %330 : vector<2x32xf32>
    %332 = arith.mulf %327, %331 : vector<2x32xf32>
    %333 = vector.shape_cast %199 : vector<2x32xf32> to vector<1x2x32xf32>
    %334 = vector.shape_cast %218 : vector<2x32xf32> to vector<1x2x32xf32>
    %335 = vector.shape_cast %237 : vector<2x32xf32> to vector<1x2x32xf32>
    %336 = vector.shape_cast %256 : vector<2x32xf32> to vector<1x2x32xf32>
    %337 = vector.shape_cast %275 : vector<2x32xf32> to vector<1x2x32xf32>
    %338 = vector.shape_cast %294 : vector<2x32xf32> to vector<1x2x32xf32>
    %339 = vector.shape_cast %313 : vector<2x32xf32> to vector<1x2x32xf32>
    %340 = vector.shape_cast %332 : vector<2x32xf32> to vector<1x2x32xf32>
    %341 = tpu.concatenate %333, %334, %335, %336, %337, %338, %339, %340 in 0 : vector<1x2x32xf32>, vector<1x2x32xf32>, vector<1x2x32xf32>, vector<1x2x32xf32>, vector<1x2x32xf32>, vector<1x2x32xf32>, vector<1x2x32xf32>, vector<1x2x32xf32> -> vector<8x2x32xf32>
    %c120 = arith.constant 120 : index
    %c0_45 = arith.constant 0 : index
    %342 = vector.load %arg1[%c120, %c0_45] : memref<128x128xf32, #tpu.memory_space<vmem>>, vector<1x32xf32>
    %c121 = arith.constant 121 : index
    %c0_46 = arith.constant 0 : index
    %343 = vector.load %arg1[%c121, %c0_46] : memref<128x128xf32, #tpu.memory_space<vmem>>, vector<1x1xf32>
    %344 = vector.shape_cast %342 : vector<1x32xf32> to vector<1x1x32xf32>
    %345 = vector.broadcast %344 : vector<1x1x32xf32> to vector<8x2x32xf32>
    %346 = arith.mulf %341, %345 : vector<8x2x32xf32>
    %cst_47 = arith.constant dense<0.000000e+00> : vector<8x2xf32>
    %347 = vector.multi_reduction <add>, %346, %cst_47 [2] : vector<8x2x32xf32> to vector<8x2xf32>
    %348 = vector.shape_cast %347 : vector<8x2xf32> to vector<8x2x1xf32>
    %349 = vector.shape_cast %343 : vector<1x1xf32> to vector<1x1x1xf32>
    %350 = vector.broadcast %349 : vector<1x1x1xf32> to vector<8x2x1xf32>
    %351 = arith.addf %348, %350 : vector<8x2x1xf32>
    %c0_48 = arith.constant 0 : index
    %c0_49 = arith.constant 0 : index
    %c0_50 = arith.constant 0 : index
    %352 = vector.load %arg2[%c0_48, %c0_49, %c0_50] : memref<8x2x1xf32, #tpu.memory_space<vmem>>, vector<8x2x1xf32>
    tpu.vector_store %arg2[%c0_48, %c0_49, %c0_50], %351 {strides = array<i32>} : memref<8x2x1xf32, #tpu.memory_space<vmem>>, vector<8x2x1xf32>,
    return
  }
}

</mosaic_0001>

<llo_original>
// kernel: tpu_custom_call.1
$region0: #{tpu_custom_call.1}
  #allocation0 [shape = 'u32[]', space=smem, size = 0x4, offset = 0x4, fixed_abs, tag = 'smem constant byte address 0x4 - core index']
  #allocation1 [shape = 'u32[144,128]{1,0:T(1,128)}', space=vmem, size = 0x12000, scoped, tag = 'internal scratch']
  %s0 = inlined_call_operand.vmem [shape: f32[16,8], index: 0, kind: input, shape index: {}]
  %s1 = inlined_call_operand.hbm [shape: f32[128,128], index: 1, kind: input, shape index: {}]
  %s2 = inlined_call_operand.vmem [shape: f32[8,2,1], index: 2, kind: output, shape index: {}]
  %s3 = sld [smem:[#allocation0]]
  $region22: #{tpu_custom_call.1} parent=0
    _
  %s5 = ssub.s32 1, %s3
  %s6 = scalar_select 0, %s5, %s3
  $region1: #{tpu_custom_call.1} parent=0
    #allocation2 [shape = 'u8[65536]{0}', space=vmem, size = 0x10000, scoped, tag = 'input window, operand 1, single buffered']
    #allocation3 [shape = 's32[1]{0}', space=sflag, size = 0x4, scoped, tag = 'scoped memory for tpu_custom_call.1']
    %7 = vsyncpa [#allocation3], 0
    // Predicated region
    $region2: #{tpu_custom_call.1} parent=1 // pred_check
      _
    $region3: #{tpu_custom_call.1} parent=1 // pred_check_branch
      %9 = sbr.rel (0) target = $region5
    $region4: #{tpu_custom_call.1} parent=1 // pred_region
      _
    $region5: #{tpu_custom_call.1} parent=1 // pred_fallthru
      _
    // Predicated region
    $region6: #{tpu_custom_call.1} parent=1 // pred_check
      _
    $region7: #{tpu_custom_call.1} parent=1 // pred_check_branch
      %11 = sbr.rel (0) target = $region9
    $region8: #{tpu_custom_call.1} parent=1 // pred_region
      %s13 = ssub.s32 2048, 2048
      %14 = vsyncadd [#allocation3], %s13
      %s15 = sshll.u32 [#allocation2], 4
      %s16 = int_to_ptr.vmem [resolvable:$true] %s15
      %21 = dma.hbm_to_vmem [thread:$0]  %s1, 2048, %s16, [#allocation3], 128, 128, 8
    $region9: #{tpu_custom_call.1} parent=1 // pred_fallthru
      _
    // Predicated region
    $region10: #{tpu_custom_call.1} parent=1 // pred_check
      _
    $region11: #{tpu_custom_call.1} parent=1 // pred_check_branch
      %23 = sbr.rel (0) target = $region13
    $region12: #{tpu_custom_call.1} parent=1 // pred_region
      %24 = dma.done [#allocation3], 2048
    $region13: #{tpu_custom_call.1} parent=1 // pred_fallthru
      _
    %v26 = vld [vmem:[%s0] sm:$0xff]
    %v27 = vld [vmem:[%s0 + $0x8] sm:$0xff]
    %v28 = vld [vmem:[#allocation2] sm:$0xff]
    %v29 = vld [vmem:[#allocation2 + $0x28] sm:$0x1]
    %v30 = vlaneseq
    %v31 = vshrl.u32 %v30, 7
    %v32 = vsub.s32 0, %v31
    %v33 = vrot.slane %v29, %v32
    %vm34 = vcmask 64512
    %v36 = vsel %vm34, %v26, 0
    %v39 = vsel %vm34, %v27, 0
    %41 = vmatprep.subr.mxu0 0.0
    %42 = vmatpush1.msra.mxu0 0.0
    %43 = vmatprep.subr.mxu0 0.0
    %44 = vmatpush1.msra.mxu0 0.0
    %45 = vmatprep.subr.mxu0 0.0
    %46 = vmatpush1.msra.mxu0 0.0
    %47 = vmatprep.subr.mxu0 0.0
    %48 = vmatpush1.msra.mxu0 0.0
    %49 = vmatprep.subr.mxu0 0.0
    %50 = vmatpush1.msra.mxu0 0.0
    %51 = vmatprep.subr.mxu0 0.0
    %52 = vmatpush1.msra.mxu0 0.0
    %53 = vmatprep.subr.mxu0 0.0
    %54 = vmatpush1.msra.mxu0 0.0
    %55 = vmatprep.subr.mxu0 0.0
    %56 = vmatpush1.msra.mxu0 0.0
    %57 = vmatprep.subr.mxu0 0.0
    %58 = vmatpush1.msra.mxu0 0.0
    %59 = vmatprep.subr.mxu0 0.0
    %60 = vmatpush1.msra.mxu0 0.0
    %61 = vmatprep.subr.mxu0 0.0
    %62 = vmatpush1.msra.mxu0 0.0
    %63 = vmatprep.subr.mxu0 0.0
    %64 = vmatpush1.msra.mxu0 0.0
    %65 = vmatprep.subr.mxu0 0.0
    %66 = vmatpush1.msra.mxu0 0.0
    %67 = vmatprep.subr.mxu0 0.0
    %68 = vmatpush1.msra.mxu0 0.0
    %69 = vmatprep.subr.mxu0 0.0
    %70 = vmatpush1.msra.mxu0 0.0
    %71 = vmatprep.subr.mxu0 0.0
    %72 = vmatpush1.msra.mxu0 %v28
    %73 = vmatprep.subr.mxu0 0.0
    %74 = vmatpush2.msra.mxu0 0.0
    %75 = vmatprep.subr.mxu0 0.0
    %76 = vmatpush2.msra.mxu0 0.0
    %77 = vmatprep.subr.mxu0 0.0
    %78 = vmatpush2.msra.mxu0 0.0
    %79 = vmatprep.subr.mxu0 0.0
    %80 = vmatpush2.msra.mxu0 0.0
    %81 = vmatprep.subr.mxu0 0.0
    %82 = vmatpush2.msra.mxu0 0.0
    %83 = vmatprep.subr.mxu0 0.0
    %84 = vmatpush2.msra.mxu0 0.0
    %85 = vmatprep.subr.mxu0 0.0
    %86 = vmatpush2.msra.mxu0 0.0
    %87 = vmatprep.subr.mxu0 0.0
    %88 = vmatpush2.msra.mxu0 0.0
    %89 = vmatprep.subr.mxu0 0.0
    %90 = vmatpush2.msra.mxu0 0.0
    %91 = vmatprep.subr.mxu0 0.0
    %92 = vmatpush2.msra.mxu0 0.0
    %93 = vmatprep.subr.mxu0 0.0
    %94 = vmatpush2.msra.mxu0 0.0
    %95 = vmatprep.subr.mxu0 0.0
    %96 = vmatpush2.msra.mxu0 0.0
    %97 = vmatprep.subr.mxu0 0.0
    %98 = vmatpush2.msra.mxu0 0.0
    %99 = vmatprep.subr.mxu0 0.0
    %100 = vmatpush2.msra.mxu0 0.0
    %101 = vmatprep.subr.mxu0 0.0
    %102 = vmatpush2.msra.mxu0 0.0
    %103 = vmatprep.subr.mxu0 0.0
    %104 = vmatpush2.msra.mxu0 0.0
    %105 = vmatprep.mubr.f32.mxu0 0.0
    %106 = vmatmul.mubr.f32.gmra.mxu0 %v36
    %v107 = vpop.f32.mrf.mxu0
    %v108 = vadd.f32 %v33, %v107
    %v109 = vpop.f32.mrf.mxu0
    %110 = vmatprep.mubr.f32.mxu0 0.0
    %111 = vmatmul.mubr.f32.gmra.mxu0 %v39
    %v112 = vpop.f32.mrf.mxu0
    %v113 = vadd.f32 %v33, %v112
    %v114 = vpop.f32.mrf.mxu0
    %115 = vdwg.mxu0
    %v116 = vld [vmem:[#allocation2 + $0x8] sm:$0xff]
    %v117 = vld [vmem:[#allocation2 + $0x10] sm:$0xff]
    %v118 = vld [vmem:[#allocation2 + $0x18] sm:$0xff]
    %v119 = vld [vmem:[#allocation2 + $0x20] sm:$0xff]
    %v120 = vpack.c.bf16 %v117, %v116
    %v121 = vpack.c.bf16 %v119, %v118
    %vm122 = vcmask 261120
    %v124 = vsel %vm122, 0, 0
    %126 = vmatprep.subr.bf16.mxu0 0
    %127 = vmatpush1.bf16.msra.mxu0 0
    %128 = vmatprep.subr.bf16.mxu0 0
    %129 = vmatpush1.bf16.msra.mxu0 0
    %130 = vmatprep.subr.bf16.mxu0 0
    %131 = vmatpush1.bf16.msra.mxu0 0
    %132 = vmatprep.subr.bf16.mxu0 0
    %133 = vmatpush1.bf16.msra.mxu0 0
    %134 = vmatprep.subr.bf16.mxu0 0
    %135 = vmatpush1.bf16.msra.mxu0 0
    %136 = vmatprep.subr.bf16.mxu0 0
    %137 = vmatpush1.bf16.msra.mxu0 0
    %138 = vmatprep.subr.bf16.mxu0 0
    %139 = vmatpush1.bf16.msra.mxu0 %v121
    %140 = vmatprep.subr.bf16.mxu0 0
    %141 = vmatpush1.bf16.msra.mxu0 %v120
    %142 = vmatprep.subr.bf16.mxu0 0
    %143 = vmatpush2.bf16.msra.mxu0 0
    %144 = vmatprep.subr.bf16.mxu0 0
    %145 = vmatpush2.bf16.msra.mxu0 0
    %146 = vmatprep.subr.bf16.mxu0 0
    %147 = vmatpush2.bf16.msra.mxu0 0
    %148 = vmatprep.subr.bf16.mxu0 0
    %149 = vmatpush2.bf16.msra.mxu0 0
    %150 = vmatprep.subr.bf16.mxu0 0
    %151 = vmatpush2.bf16.msra.mxu0 0
    %152 = vmatprep.subr.bf16.mxu0 0
    %153 = vmatpush2.bf16.msra.mxu0 0
    %154 = vmatprep.subr.bf16.mxu0 0
    %155 = vmatpush2.bf16.msra.mxu0 0
    %156 = vmatprep.subr.bf16.mxu0 0
    %157 = vmatpush2.bf16.msra.mxu0 0
    %158 = vmatprep.mubr.bf16.mxu0 0
    %159 = vmatmul.mubr.bf16.gmra.mxu0 %v124
    %v160 = vpop.f32.mrf.mxu0
    %v161 = vadd.f32 0.0, %v160
    %v162 = vpop.f32.mrf.mxu0
    %v163 = vpop.f32.mrf.mxu0
    %v164 = vpop.f32.mrf.mxu0
    %165 = vdwg.mxu0
    %v166 = vadd.f32 %v108, %v161
    %v167 = vxor.u32 %v166, 2147483648
    %v168 = vmul.f32 %v167, 1.442695
    %v169 = vpow.pop %v168
    %v170 = vadd.f32 %v169, 1.0
    %v171 = vrcp.pop %v170
    %v172 = vmul.f32 1.0, %v171
    %v173 = vtanh.pop %v166
    %v174 = vmul.f32 %v172, 0.0
    %176 = vrot.lane.b32.xlu0 %v173, 64
    %v177 = vpop.permute.xlu0 %176
    %v179 = vmul.f32 %v172, %v177
    %181 = vrot.lane.b32.xlu0 %v179, 32
    %v182 = vpop.permute.xlu0 %181
    %v184 = vadd.f32 %v174, %v182
    %v185 = vtanh.pop %v184
    %187 = vrot.lane.b32.xlu0 %v185, 64
    %v188 = vpop.permute.xlu0 %187
    %v190 = vmul.f32 %v172, %v188
    %v191 = vpack.c.bf16 %v190, %v190
    %193 = vrot.lane.b32.xlu0 %v191, 32
    %v194 = vpop.permute.xlu0 %193
    %v196 = vsel %vm122, %v194, 0
    %198 = vmatprep.subr.bf16.mxu0 0
    %199 = vmatpush1.bf16.msra.mxu0 0
    %200 = vmatprep.subr.bf16.mxu0 0
    %201 = vmatpush1.bf16.msra.mxu0 0
    %202 = vmatprep.subr.bf16.mxu0 0
    %203 = vmatpush1.bf16.msra.mxu0 0
    %204 = vmatprep.subr.bf16.mxu0 0
    %205 = vmatpush1.bf16.msra.mxu0 0
    %206 = vmatprep.subr.bf16.mxu0 0
    %207 = vmatpush1.bf16.msra.mxu0 0
    %208 = vmatprep.subr.bf16.mxu0 0
    %209 = vmatpush1.bf16.msra.mxu0 0
    %210 = vmatprep.subr.bf16.mxu0 0
    %211 = vmatpush1.bf16.msra.mxu0 %v121
    %212 = vmatprep.subr.bf16.mxu0 0
    %213 = vmatpush1.bf16.msra.mxu0 %v120
    %214 = vmatprep.subr.bf16.mxu0 0
    %215 = vmatpush2.bf16.msra.mxu0 0
    %216 = vmatprep.subr.bf16.mxu0 0
    %217 = vmatpush2.bf16.msra.mxu0 0
    %218 = vmatprep.subr.bf16.mxu0 0
    %219 = vmatpush2.bf16.msra.mxu0 0
    %220 = vmatprep.subr.bf16.mxu0 0
    %221 = vmatpush2.bf16.msra.mxu0 0
    %222 = vmatprep.subr.bf16.mxu0 0
    %223 = vmatpush2.bf16.msra.mxu0 0
    %224 = vmatprep.subr.bf16.mxu0 0
    %225 = vmatpush2.bf16.msra.mxu0 0
    %226 = vmatprep.subr.bf16.mxu0 0
    %227 = vmatpush2.bf16.msra.mxu0 0
    %228 = vmatprep.subr.bf16.mxu0 0
    %229 = vmatpush2.bf16.msra.mxu0 0
    %230 = vmatprep.mubr.bf16.mxu0 0
    %231 = vmatmul.mubr.bf16.gmra.mxu0 %v196
    %v232 = vpop.f32.mrf.mxu0
    %v233 = vadd.f32 0.0, %v232
    %v234 = vpop.f32.mrf.mxu0
    %v235 = vpop.f32.mrf.mxu0
    %v236 = vpop.f32.mrf.mxu0
    %237 = vdwg.mxu0
    %v239 = vrot.slane %v233, 6
    %v241 = vadd.f32 %v108, %v239
    %v242 = vxor.u32 %v241, 2147483648
    %v243 = vmul.f32 %v242, 1.442695
    %v244 = vpow.pop %v243
    %v245 = vadd.f32 %v244, 1.0
    %v246 = vrcp.pop %v245
    %v247 = vmul.f32 1.0, %v246
    %v248 = vtanh.pop %v241
    %v250 = vrot.slane %v184, 6
    %v252 = vmul.f32 %v247, %v250
    %254 = vrot.lane.b32.xlu0 %v248, 64
    %v255 = vpop.permute.xlu0 %254
    %v257 = vmul.f32 %v247, %v255
    %259 = vrot.lane.b32.xlu0 %v257, 32
    %v260 = vpop.permute.xlu0 %259
    %v262 = vadd.f32 %v252, %v260
    %v263 = vtanh.pop %v262
    %265 = vrot.lane.b32.xlu0 %v263, 64
    %v266 = vpop.permute.xlu0 %265
    %v268 = vmul.f32 %v247, %v266
    %v269 = vpack.c.bf16 %v268, %v268
    %v271 = vrot.slane %v269, 1
    %272 = vrot.lane.b32.xlu0 %v271, 32
    %v273 = vpop.permute.xlu0 %272
    %v275 = vsel %vm122, %v273, 0
    %277 = vmatprep.subr.bf16.mxu0 0
    %278 = vmatpush1.bf16.msra.mxu0 0
    %279 = vmatprep.subr.bf16.mxu0 0
    %280 = vmatpush1.bf16.msra.mxu0 0
    %281 = vmatprep.subr.bf16.mxu0 0
    %282 = vmatpush1.bf16.msra.mxu0 0
    %283 = vmatprep.subr.bf16.mxu0 0
    %284 = vmatpush1.bf16.msra.mxu0 0
    %285 = vmatprep.subr.bf16.mxu0 0
    %286 = vmatpush1.bf16.msra.mxu0 0
    %287 = vmatprep.subr.bf16.mxu0 0
    %288 = vmatpush1.bf16.msra.mxu0 0
    %289 = vmatprep.subr.bf16.mxu0 0
    %290 = vmatpush1.bf16.msra.mxu0 %v121
    %291 = vmatprep.subr.bf16.mxu0 0
    %292 = vmatpush1.bf16.msra.mxu0 %v120
    %293 = vmatprep.subr.bf16.mxu0 0
    %294 = vmatpush2.bf16.msra.mxu0 0
    %295 = vmatprep.subr.bf16.mxu0 0
    %296 = vmatpush2.bf16.msra.mxu0 0
    %297 = vmatprep.subr.bf16.mxu0 0
    %298 = vmatpush2.bf16.msra.mxu0 0
    %299 = vmatprep.subr.bf16.mxu0 0
    %300 = vmatpush2.bf16.msra.mxu0 0
    %301 = vmatprep.subr.bf16.mxu0 0
    %302 = vmatpush2.bf16.msra.mxu0 0
    %303 = vmatprep.subr.bf16.mxu0 0
    %304 = vmatpush2.bf16.msra.mxu0 0
    %305 = vmatprep.subr.bf16.mxu0 0
    %306 = vmatpush2.bf16.msra.mxu0 0
    %307 = vmatprep.subr.bf16.mxu0 0
    %308 = vmatpush2.bf16.msra.mxu0 0
    %309 = vmatprep.mubr.bf16.mxu0 0
    %310 = vmatmul.mubr.bf16.gmra.mxu0 %v275
    %v311 = vpop.f32.mrf.mxu0
    %v312 = vadd.f32 0.0, %v311
    %v313 = vpop.f32.mrf.mxu0
    %v314 = vpop.f32.mrf.mxu0
    %v315 = vpop.f32.mrf.mxu0
    %316 = vdwg.mxu0
    %v318 = vrot.slane %v312, 4
    %v320 = vadd.f32 %v108, %v318
    %v321 = vxor.u32 %v320, 2147483648
    %v322 = vmul.f32 %v321, 1.442695
    %v323 = vpow.pop %v322
    %v324 = vadd.f32 %v323, 1.0
    %v325 = vrcp.pop %v324
    %v326 = vmul.f32 1.0, %v325
    %v327 = vtanh.pop %v320
    %v329 = vrot.slane %v262, 6
    %v331 = vmul.f32 %v326, %v329
    %333 = vrot.lane.b32.xlu0 %v327, 64
    %v334 = vpop.permute.xlu0 %333
    %v336 = vmul.f32 %v326, %v334
    %338 = vrot.lane.b32.xlu0 %v336, 32
    %v339 = vpop.permute.xlu0 %338
    %v341 = vadd.f32 %v331, %v339
    %v342 = vtanh.pop %v341
    %344 = vrot.lane.b32.xlu0 %v342, 64
    %v345 = vpop.permute.xlu0 %344
    %v347 = vmul.f32 %v326, %v345
    %v348 = vpack.c.bf16 %v347, %v347
    %v350 = vrot.slane %v348, 2
    %351 = vrot.lane.b32.xlu0 %v350, 32
    %v352 = vpop.permute.xlu0 %351
    %v354 = vsel %vm122, %v352, 0
    %356 = vmatprep.subr.bf16.mxu0 0
    %357 = vmatpush1.bf16.msra.mxu0 0
    %358 = vmatprep.subr.bf16.mxu0 0
    %359 = vmatpush1.bf16.msra.mxu0 0
    %360 = vmatprep.subr.bf16.mxu0 0
    %361 = vmatpush1.bf16.msra.mxu0 0
    %362 = vmatprep.subr.bf16.mxu0 0
    %363 = vmatpush1.bf16.msra.mxu0 0
    %364 = vmatprep.subr.bf16.mxu0 0
    %365 = vmatpush1.bf16.msra.mxu0 0
    %366 = vmatprep.subr.bf16.mxu0 0
    %367 = vmatpush1.bf16.msra.mxu0 0
    %368 = vmatprep.subr.bf16.mxu0 0
    %369 = vmatpush1.bf16.msra.mxu0 %v121
    %370 = vmatprep.subr.bf16.mxu0 0
    %371 = vmatpush1.bf16.msra.mxu0 %v120
    %372 = vmatprep.subr.bf16.mxu0 0
    %373 = vmatpush2.bf16.msra.mxu0 0
    %374 = vmatprep.subr.bf16.mxu0 0
    %375 = vmatpush2.bf16.msra.mxu0 0
    %376 = vmatprep.subr.bf16.mxu0 0
    %377 = vmatpush2.bf16.msra.mxu0 0
    %378 = vmatprep.subr.bf16.mxu0 0
    %379 = vmatpush2.bf16.msra.mxu0 0
    %380 = vmatprep.subr.bf16.mxu0 0
    %381 = vmatpush2.bf16.msra.mxu0 0
    %382 = vmatprep.subr.bf16.mxu0 0
    %383 = vmatpush2.bf16.msra.mxu0 0
    %384 = vmatprep.subr.bf16.mxu0 0
    %385 = vmatpush2.bf16.msra.mxu0 0
    %386 = vmatprep.subr.bf16.mxu0 0
    %387 = vmatpush2.bf16.msra.mxu0 0
    %388 = vmatprep.mubr.bf16.mxu0 0
    %389 = vmatmul.mubr.bf16.gmra.mxu0 %v354
    %v390 = vpop.f32.mrf.mxu0
    %v391 = vadd.f32 0.0, %v390
    %v392 = vpop.f32.mrf.mxu0
    %v393 = vpop.f32.mrf.mxu0
    %v394 = vpop.f32.mrf.mxu0
    %395 = vdwg.mxu0
    %v397 = vrot.slane %v391, 2
    %v399 = vadd.f32 %v108, %v397
    %v400 = vxor.u32 %v399, 2147483648
    %v401 = vmul.f32 %v400, 1.442695
    %v402 = vpow.pop %v401
    %v403 = vadd.f32 %v402, 1.0
    %v404 = vrcp.pop %v403
    %v405 = vmul.f32 1.0, %v404
    %v406 = vtanh.pop %v399
    %v408 = vrot.slane %v341, 6
    %v410 = vmul.f32 %v405, %v408
    %412 = vrot.lane.b32.xlu0 %v406, 64
    %v413 = vpop.permute.xlu0 %412
    %v415 = vmul.f32 %v405, %v413
    %417 = vrot.lane.b32.xlu0 %v415, 32
    %v418 = vpop.permute.xlu0 %417
    %v420 = vadd.f32 %v410, %v418
    %v421 = vtanh.pop %v420
    %423 = vrot.lane.b32.xlu0 %v421, 64
    %v424 = vpop.permute.xlu0 %423
    %v426 = vmul.f32 %v405, %v424
    %v427 = vpack.c.bf16 %v426, %v426
    %v429 = vrot.slane %v427, 3
    %430 = vrot.lane.b32.xlu0 %v429, 32
    %v431 = vpop.permute.xlu0 %430
    %v433 = vsel %vm122, %v431, 0
    %435 = vmatprep.subr.bf16.mxu0 0
    %436 = vmatpush1.bf16.msra.mxu0 0
    %437 = vmatprep.subr.bf16.mxu0 0
    %438 = vmatpush1.bf16.msra.mxu0 0
    %439 = vmatprep.subr.bf16.mxu0 0
    %440 = vmatpush1.bf16.msra.mxu0 0
    %441 = vmatprep.subr.bf16.mxu0 0
    %442 = vmatpush1.bf16.msra.mxu0 0
    %443 = vmatprep.subr.bf16.mxu0 0
    %444 = vmatpush1.bf16.msra.mxu0 0
    %445 = vmatprep.subr.bf16.mxu0 0
    %446 = vmatpush1.bf16.msra.mxu0 0
    %447 = vmatprep.subr.bf16.mxu0 0
    %448 = vmatpush1.bf16.msra.mxu0 %v121
    %449 = vmatprep.subr.bf16.mxu0 0
    %450 = vmatpush1.bf16.msra.mxu0 %v120
    %451 = vmatprep.subr.bf16.mxu0 0
    %452 = vmatpush2.bf16.msra.mxu0 0
    %453 = vmatprep.subr.bf16.mxu0 0
    %454 = vmatpush2.bf16.msra.mxu0 0
    %455 = vmatprep.subr.bf16.mxu0 0
    %456 = vmatpush2.bf16.msra.mxu0 0
    %457 = vmatprep.subr.bf16.mxu0 0
    %458 = vmatpush2.bf16.msra.mxu0 0
    %459 = vmatprep.subr.bf16.mxu0 0
    %460 = vmatpush2.bf16.msra.mxu0 0
    %461 = vmatprep.subr.bf16.mxu0 0
    %462 = vmatpush2.bf16.msra.mxu0 0
    %463 = vmatprep.subr.bf16.mxu0 0
    %464 = vmatpush2.bf16.msra.mxu0 0
    %465 = vmatprep.subr.bf16.mxu0 0
    %466 = vmatpush2.bf16.msra.mxu0 0
    %467 = vmatprep.mubr.bf16.mxu0 0
    %468 = vmatmul.mubr.bf16.gmra.mxu0 %v433
    %v469 = vpop.f32.mrf.mxu0
    %v470 = vadd.f32 0.0, %v469
    %v471 = vpop.f32.mrf.mxu0
    %v472 = vpop.f32.mrf.mxu0
    %v473 = vpop.f32.mrf.mxu0
    %474 = vdwg.mxu0
    %v475 = vadd.f32 %v113, %v470
    %v476 = vxor.u32 %v475, 2147483648
    %v477 = vmul.f32 %v476, 1.442695
    %v478 = vpow.pop %v477
    %v479 = vadd.f32 %v478, 1.0
    %v480 = vrcp.pop %v479
    %v481 = vmul.f32 1.0, %v480
    %v482 = vtanh.pop %v475
    %v484 = vrot.slane %v420, 6
    %v486 = vmul.f32 %v481, %v484
    %488 = vrot.lane.b32.xlu0 %v482, 64
    %v489 = vpop.permute.xlu0 %488
    %v491 = vmul.f32 %v481, %v489
    %493 = vrot.lane.b32.xlu0 %v491, 32
    %v494 = vpop.permute.xlu0 %493
    %v496 = vadd.f32 %v486, %v494
    %v497 = vtanh.pop %v496
    %499 = vrot.lane.b32.xlu0 %v497, 64
    %v500 = vpop.permute.xlu0 %499
    %v502 = vmul.f32 %v481, %v500
    %v503 = vpack.c.bf16 %v502, %v502
    %505 = vrot.lane.b32.xlu0 %v503, 32
    %v506 = vpop.permute.xlu0 %505
    %v508 = vsel %vm122, %v506, 0
    %510 = vmatprep.subr.bf16.mxu0 0
    %511 = vmatpush1.bf16.msra.mxu0 0
    %512 = vmatprep.subr.bf16.mxu0 0
    %513 = vmatpush1.bf16.msra.mxu0 0
    %514 = vmatprep.subr.bf16.mxu0 0
    %515 = vmatpush1.bf16.msra.mxu0 0
    %516 = vmatprep.subr.bf16.mxu0 0
    %517 = vmatpush1.bf16.msra.mxu0 0
    %518 = vmatprep.subr.bf16.mxu0 0
    %519 = vmatpush1.bf16.msra.mxu0 0
    %520 = vmatprep.subr.bf16.mxu0 0
    %521 = vmatpush1.bf16.msra.mxu0 0
    %522 = vmatprep.subr.bf16.mxu0 0
    %523 = vmatpush1.bf16.msra.mxu0 %v121
    %524 = vmatprep.subr.bf16.mxu0 0
    %525 = vmatpush1.bf16.msra.mxu0 %v120
    %526 = vmatprep.subr.bf16.mxu0 0
    %527 = vmatpush2.bf16.msra.mxu0 0
    %528 = vmatprep.subr.bf16.mxu0 0
    %529 = vmatpush2.bf16.msra.mxu0 0
    %530 = vmatprep.subr.bf16.mxu0 0
    %531 = vmatpush2.bf16.msra.mxu0 0
    %532 = vmatprep.subr.bf16.mxu0 0
    %533 = vmatpush2.bf16.msra.mxu0 0
    %534 = vmatprep.subr.bf16.mxu0 0
    %535 = vmatpush2.bf16.msra.mxu0 0
    %536 = vmatprep.subr.bf16.mxu0 0
    %537 = vmatpush2.bf16.msra.mxu0 0
    %538 = vmatprep.subr.bf16.mxu0 0
    %539 = vmatpush2.bf16.msra.mxu0 0
    %540 = vmatprep.subr.bf16.mxu0 0
    %541 = vmatpush2.bf16.msra.mxu0 0
    %542 = vmatprep.mubr.bf16.mxu0 0
    %543 = vmatmul.mubr.bf16.gmra.mxu0 %v508
    %v544 = vpop.f32.mrf.mxu0
    %v545 = vadd.f32 0.0, %v544
    %v546 = vpop.f32.mrf.mxu0
    %v547 = vpop.f32.mrf.mxu0
    %v548 = vpop.f32.mrf.mxu0
    %549 = vdwg.mxu0
    %v551 = vrot.slane %v545, 6
    %v553 = vadd.f32 %v113, %v551
    %v554 = vxor.u32 %v553, 2147483648
    %v555 = vmul.f32 %v554, 1.442695
    %v556 = vpow.pop %v555
    %v557 = vadd.f32 %v556, 1.0
    %v558 = vrcp.pop %v557
    %v559 = vmul.f32 1.0, %v558
    %v560 = vtanh.pop %v553
    %v562 = vrot.slane %v496, 6
    %v564 = vmul.f32 %v559, %v562
    %566 = vrot.lane.b32.xlu0 %v560, 64
    %v567 = vpop.permute.xlu0 %566
    %v569 = vmul.f32 %v559, %v567
    %571 = vrot.lane.b32.xlu0 %v569, 32
    %v572 = vpop.permute.xlu0 %571
    %v574 = vadd.f32 %v564, %v572
    %v575 = vtanh.pop %v574
    %577 = vrot.lane.b32.xlu0 %v575, 64
    %v578 = vpop.permute.xlu0 %577
    %v580 = vmul.f32 %v559, %v578
    %v581 = vpack.c.bf16 %v580, %v580
    %v583 = vrot.slane %v581, 1
    %584 = vrot.lane.b32.xlu0 %v583, 32
    %v585 = vpop.permute.xlu0 %584
    %v587 = vsel %vm122, %v585, 0
    %589 = vmatprep.subr.bf16.mxu0 0
    %590 = vmatpush1.bf16.msra.mxu0 0
    %591 = vmatprep.subr.bf16.mxu0 0
    %592 = vmatpush1.bf16.msra.mxu0 0
    %593 = vmatprep.subr.bf16.mxu0 0
    %594 = vmatpush1.bf16.msra.mxu0 0
    %595 = vmatprep.subr.bf16.mxu0 0
    %596 = vmatpush1.bf16.msra.mxu0 0
    %597 = vmatprep.subr.bf16.mxu0 0
    %598 = vmatpush1.bf16.msra.mxu0 0
    %599 = vmatprep.subr.bf16.mxu0 0
    %600 = vmatpush1.bf16.msra.mxu0 0
    %601 = vmatprep.subr.bf16.mxu0 0
    %602 = vmatpush1.bf16.msra.mxu0 %v121
    %603 = vmatprep.subr.bf16.mxu0 0
    %604 = vmatpush1.bf16.msra.mxu0 %v120
    %605 = vmatprep.subr.bf16.mxu0 0
    %606 = vmatpush2.bf16.msra.mxu0 0
    %607 = vmatprep.subr.bf16.mxu0 0
    %608 = vmatpush2.bf16.msra.mxu0 0
    %609 = vmatprep.subr.bf16.mxu0 0
    %610 = vmatpush2.bf16.msra.mxu0 0
    %611 = vmatprep.subr.bf16.mxu0 0
    %612 = vmatpush2.bf16.msra.mxu0 0
    %613 = vmatprep.subr.bf16.mxu0 0
    %614 = vmatpush2.bf16.msra.mxu0 0
    %615 = vmatprep.subr.bf16.mxu0 0
    %616 = vmatpush2.bf16.msra.mxu0 0
    %617 = vmatprep.subr.bf16.mxu0 0
    %618 = vmatpush2.bf16.msra.mxu0 0
    %619 = vmatprep.subr.bf16.mxu0 0
    %620 = vmatpush2.bf16.msra.mxu0 0
    %621 = vmatprep.mubr.bf16.mxu0 0
    %622 = vmatmul.mubr.bf16.gmra.mxu0 %v587
    %v623 = vpop.f32.mrf.mxu0
    %v624 = vadd.f32 0.0, %v623
    %v625 = vpop.f32.mrf.mxu0
    %v626 = vpop.f32.mrf.mxu0
    %v627 = vpop.f32.mrf.mxu0
    %628 = vdwg.mxu0
    %v630 = vrot.slane %v624, 4
    %v632 = vadd.f32 %v113, %v630
    %v633 = vxor.u32 %v632, 2147483648
    %v634 = vmul.f32 %v633, 1.442695
    %v635 = vpow.pop %v634
    %v636 = vadd.f32 %v635, 1.0
    %v637 = vrcp.pop %v636
    %v638 = vmul.f32 1.0, %v637
    %v639 = vtanh.pop %v632
    %v641 = vrot.slane %v574, 6
    %v643 = vmul.f32 %v638, %v641
    %645 = vrot.lane.b32.xlu0 %v639, 64
    %v646 = vpop.permute.xlu0 %645
    %v648 = vmul.f32 %v638, %v646
    %650 = vrot.lane.b32.xlu0 %v648, 32
    %v651 = vpop.permute.xlu0 %650
    %v653 = vadd.f32 %v643, %v651
    %v654 = vtanh.pop %v653
    %656 = vrot.lane.b32.xlu0 %v654, 64
    %v657 = vpop.permute.xlu0 %656
    %v659 = vmul.f32 %v638, %v657
    %v660 = vpack.c.bf16 %v659, %v659
    %v662 = vrot.slane %v660, 2
    %663 = vrot.lane.b32.xlu0 %v662, 32
    %v664 = vpop.permute.xlu0 %663
    %v666 = vsel %vm122, %v664, 0
    %668 = vmatprep.subr.bf16.mxu0 0
    %669 = vmatpush1.bf16.msra.mxu0 0
    %670 = vmatprep.subr.bf16.mxu0 0
    %671 = vmatpush1.bf16.msra.mxu0 0
    %672 = vmatprep.subr.bf16.mxu0 0
    %673 = vmatpush1.bf16.msra.mxu0 0
    %674 = vmatprep.subr.bf16.mxu0 0
    %675 = vmatpush1.bf16.msra.mxu0 0
    %676 = vmatprep.subr.bf16.mxu0 0
    %677 = vmatpush1.bf16.msra.mxu0 0
    %678 = vmatprep.subr.bf16.mxu0 0
    %679 = vmatpush1.bf16.msra.mxu0 0
    %680 = vmatprep.subr.bf16.mxu0 0
    %681 = vmatpush1.bf16.msra.mxu0 %v121
    %682 = vmatprep.subr.bf16.mxu0 0
    %683 = vmatpush1.bf16.msra.mxu0 %v120
    %684 = vmatprep.subr.bf16.mxu0 0
    %685 = vmatpush2.bf16.msra.mxu0 0
    %686 = vmatprep.subr.bf16.mxu0 0
    %687 = vmatpush2.bf16.msra.mxu0 0
    %688 = vmatprep.subr.bf16.mxu0 0
    %689 = vmatpush2.bf16.msra.mxu0 0
    %690 = vmatprep.subr.bf16.mxu0 0
    %691 = vmatpush2.bf16.msra.mxu0 0
    %692 = vmatprep.subr.bf16.mxu0 0
    %693 = vmatpush2.bf16.msra.mxu0 0
    %694 = vmatprep.subr.bf16.mxu0 0
    %695 = vmatpush2.bf16.msra.mxu0 0
    %696 = vmatprep.subr.bf16.mxu0 0
    %697 = vmatpush2.bf16.msra.mxu0 0
    %698 = vmatprep.subr.bf16.mxu0 0
    %699 = vmatpush2.bf16.msra.mxu0 0
    %700 = vmatprep.mubr.bf16.mxu0 0
    %701 = vmatmul.mubr.bf16.gmra.mxu0 %v666
    %v702 = vpop.f32.mrf.mxu0
    %v703 = vadd.f32 0.0, %v702
    %v704 = vpop.f32.mrf.mxu0
    %v705 = vpop.f32.mrf.mxu0
    %v706 = vpop.f32.mrf.mxu0
    %707 = vdwg.mxu0
    %v709 = vrot.slane %v703, 2
    %v711 = vadd.f32 %v113, %v709
    %v712 = vxor.u32 %v711, 2147483648
    %v713 = vmul.f32 %v712, 1.442695
    %v714 = vpow.pop %v713
    %v715 = vadd.f32 %v714, 1.0
    %v716 = vrcp.pop %v715
    %v717 = vmul.f32 1.0, %v716
    %v718 = vtanh.pop %v711
    %v720 = vrot.slane %v653, 6
    %v722 = vmul.f32 %v717, %v720
    %724 = vrot.lane.b32.xlu0 %v718, 64
    %v725 = vpop.permute.xlu0 %724
    %v727 = vmul.f32 %v717, %v725
    %729 = vrot.lane.b32.xlu0 %v727, 32
    %v730 = vpop.permute.xlu0 %729
    %v732 = vadd.f32 %v722, %v730
    %v733 = vtanh.pop %v732
    %735 = vrot.lane.b32.xlu0 %v733, 64
    %v736 = vpop.permute.xlu0 %735
    %v738 = vmul.f32 %v717, %v736
    %v740 = vrot.slane %v659, 6
    %v742 = vrot.slane %v580, 4
    %v744 = vrot.slane %v502, 2
    %v746 = vrot.slane %v347, 6
    %v748 = vrot.slane %v268, 4
    %v750 = vrot.slane %v190, 2
    %v753 = vcombine.high %v738, %v738
    %v755 = vunpack.c.l.s4 1983009808
    %v756 = vunpack.c.0.s8 %v755
    %v757 = vlaneseq
    %v758 = vshrl.u32 %v757, 7
    %v759 = vsub.s32 %v756, %v758
    %v760 = vrot.slane %v753, %v759
    %v761 = vcombine.high %v760, %v760
    %v762 = vcombine.high %v740, %v740
    %v764 = vunpack.c.l.s4 1983009808
    %v765 = vunpack.c.0.s8 %v764
    %v766 = vlaneseq
    %v767 = vshrl.u32 %v766, 7
    %v768 = vsub.s32 %v765, %v767
    %v769 = vrot.slane %v762, %v768
    %v770 = vcombine.high %v769, %v769
    %v771 = vcombine.high %v742, %v742
    %v773 = vunpack.c.l.s4 1983009808
    %v774 = vunpack.c.0.s8 %v773
    %v775 = vlaneseq
    %v776 = vshrl.u32 %v775, 7
    %v777 = vsub.s32 %v774, %v776
    %v778 = vrot.slane %v771, %v777
    %v779 = vcombine.high %v778, %v778
    %v780 = vcombine.high %v744, %v744
    %v782 = vunpack.c.l.s4 1983009808
    %v783 = vunpack.c.0.s8 %v782
    %v784 = vlaneseq
    %v785 = vshrl.u32 %v784, 7
    %v786 = vsub.s32 %v783, %v785
    %v787 = vrot.slane %v780, %v786
    %v788 = vcombine.high %v787, %v787
    %v789 = vcombine.high %v426, %v426
    %v791 = vunpack.c.l.s4 1983009808
    %v792 = vunpack.c.0.s8 %v791
    %v793 = vlaneseq
    %v794 = vshrl.u32 %v793, 7
    %v795 = vsub.s32 %v792, %v794
    %v796 = vrot.slane %v789, %v795
    %v797 = vcombine.high %v796, %v796
    %v798 = vcombine.high %v746, %v746
    %v800 = vunpack.c.l.s4 1983009808
    %v801 = vunpack.c.0.s8 %v800
    %v802 = vlaneseq
    %v803 = vshrl.u32 %v802, 7
    %v804 = vsub.s32 %v801, %v803
    %v805 = vrot.slane %v798, %v804
    %v806 = vcombine.high %v805, %v805
    %v807 = vcombine.high %v748, %v748
    %v809 = vunpack.c.l.s4 1983009808
    %v810 = vunpack.c.0.s8 %v809
    %v811 = vlaneseq
    %v812 = vshrl.u32 %v811, 7
    %v813 = vsub.s32 %v810, %v812
    %v814 = vrot.slane %v807, %v813
    %v815 = vcombine.high %v814, %v814
    %v816 = vcombine.high %v750, %v750
    %v818 = vunpack.c.l.s4 1983009808
    %v819 = vunpack.c.0.s8 %v818
    %v820 = vlaneseq
    %v821 = vshrl.u32 %v820, 7
    %v822 = vsub.s32 %v819, %v821
    %v823 = vrot.slane %v816, %v822
    %v824 = vcombine.high %v823, %v823
    %v825 = vld [vmem:[#allocation2 + $0x30] sm:$0xff]
    %v826 = vld [vmem:[#allocation2 + $0x38] sm:$0xff]
    %v827 = vld [vmem:[#allocation2 + $0x40] sm:$0xff]
    %v828 = vld [vmem:[#allocation2 + $0x48] sm:$0xff]
    %v829 = vld [vmem:[#allocation2 + $0x70] sm:$0x1]
    %v830 = vlaneseq
    %v831 = vshrl.u32 %v830, 7
    %v832 = vsub.s32 0, %v831
    %v833 = vrot.slane %v829, %v832
    %v834 = vcombine.low %v761, %v770
    %v835 = vcombine.low %v779, %v788
    %v837 = vunpack.c.l.s4 1983009808
    %v838 = vunpack.c.0.s8 %v837
    %v839 = vlaneseq
    %v840 = vshrl.u32 %v839, 7
    %v841 = vsub.s32 %v838, %v840
    %v842 = vrot.slane %v834, %v841
    %v844 = vunpack.c.l.s4 1983009808
    %v845 = vunpack.c.0.s8 %v844
    %v846 = vlaneseq
    %v847 = vshrl.u32 %v846, 7
    %v848 = vsub.s32 %v845, %v847
    %v849 = vrot.slane %v835, %v848
    %v850 = vcombine.low %v842, %v849
    %v851 = vcombine.low %v797, %v806
    %v852 = vcombine.low %v815, %v824
    %v854 = vunpack.c.l.s4 1983009808
    %v855 = vunpack.c.0.s8 %v854
    %v856 = vlaneseq
    %v857 = vshrl.u32 %v856, 7
    %v858 = vsub.s32 %v855, %v857
    %v859 = vrot.slane %v851, %v858
    %v861 = vunpack.c.l.s4 1983009808
    %v862 = vunpack.c.0.s8 %v861
    %v863 = vlaneseq
    %v864 = vshrl.u32 %v863, 7
    %v865 = vsub.s32 %v862, %v864
    %v866 = vrot.slane %v852, %v865
    %v867 = vcombine.low %v859, %v866
    %868 = vrot.lane.b32.xlu0 %v850, 32
    %v869 = vpop.permute.xlu0 %868
    %870 = vrot.lane.b32.xlu0 %v867, 32
    %v871 = vpop.permute.xlu0 %870
    %v872 = vsel %vm122, %v869, 0
    %v874 = vsel %vm122, %v871, 0
    %876 = vmatprep.subr.mxu0 0.0
    %877 = vmatpush1.msra.mxu0 0.0
    %878 = vmatprep.subr.mxu0 0.0
    %879 = vmatpush1.msra.mxu0 0.0
    %880 = vmatprep.subr.mxu0 0.0
    %881 = vmatpush1.msra.mxu0 0.0
    %882 = vmatprep.subr.mxu0 0.0
    %883 = vmatpush1.msra.mxu0 0.0
    %884 = vmatprep.subr.mxu0 0.0
    %885 = vmatpush1.msra.mxu0 0.0
    %886 = vmatprep.subr.mxu0 0.0
    %887 = vmatpush1.msra.mxu0 0.0
    %888 = vmatprep.subr.mxu0 0.0
    %889 = vmatpush1.msra.mxu0 0.0
    %890 = vmatprep.subr.mxu0 0.0
    %891 = vmatpush1.msra.mxu0 0.0
    %892 = vmatprep.subr.mxu0 0.0
    %893 = vmatpush1.msra.mxu0 0.0
    %894 = vmatprep.subr.mxu0 0.0
    %895 = vmatpush1.msra.mxu0 0.0
    %896 = vmatprep.subr.mxu0 0.0
    %897 = vmatpush1.msra.mxu0 0.0
    %898 = vmatprep.subr.mxu0 0.0
    %899 = vmatpush1.msra.mxu0 0.0
    %900 = vmatprep.subr.mxu0 0.0
    %901 = vmatpush1.msra.mxu0 %v828
    %902 = vmatprep.subr.mxu0 0.0
    %903 = vmatpush1.msra.mxu0 %v827
    %904 = vmatprep.subr.mxu0 0.0
    %905 = vmatpush1.msra.mxu0 %v826
    %906 = vmatprep.subr.mxu0 0.0
    %907 = vmatpush1.msra.mxu0 %v825
    %908 = vmatprep.subr.mxu0 0.0
    %909 = vmatpush2.msra.mxu0 0.0
    %910 = vmatprep.subr.mxu0 0.0
    %911 = vmatpush2.msra.mxu0 0.0
    %912 = vmatprep.subr.mxu0 0.0
    %913 = vmatpush2.msra.mxu0 0.0
    %914 = vmatprep.subr.mxu0 0.0
    %915 = vmatpush2.msra.mxu0 0.0
    %916 = vmatprep.subr.mxu0 0.0
    %917 = vmatpush2.msra.mxu0 0.0
    %918 = vmatprep.subr.mxu0 0.0
    %919 = vmatpush2.msra.mxu0 0.0
    %920 = vmatprep.subr.mxu0 0.0
    %921 = vmatpush2.msra.mxu0 0.0
    %922 = vmatprep.subr.mxu0 0.0
    %923 = vmatpush2.msra.mxu0 0.0
    %924 = vmatprep.subr.mxu0 0.0
    %925 = vmatpush2.msra.mxu0 0.0
    %926 = vmatprep.subr.mxu0 0.0
    %927 = vmatpush2.msra.mxu0 0.0
    %928 = vmatprep.subr.mxu0 0.0
    %929 = vmatpush2.msra.mxu0 0.0
    %930 = vmatprep.subr.mxu0 0.0
    %931 = vmatpush2.msra.mxu0 0.0
    %932 = vmatprep.subr.mxu0 0.0
    %933 = vmatpush2.msra.mxu0 0.0
    %934 = vmatprep.subr.mxu0 0.0
    %935 = vmatpush2.msra.mxu0 0.0
    %936 = vmatprep.subr.mxu0 0.0
    %937 = vmatpush2.msra.mxu0 0.0
    %938 = vmatprep.subr.mxu0 0.0
    %939 = vmatpush2.msra.mxu0 0.0
    %940 = vmatprep.mubr.f32.mxu0 0.0
    %941 = vmatmul.mubr.f32.gmra.mxu0 %v872
    %v942 = vpop.f32.mrf.mxu0
    %v943 = vadd.f32 %v833, %v942
    %v944 = vpop.f32.mrf.mxu0
    %945 = vmatprep.mubr.f32.mxu0 0.0
    %946 = vmatmul.mubr.f32.gmra.mxu0 %v874
    %v947 = vpop.f32.mrf.mxu0
    %v948 = vadd.f32 %v833, %v947
    %v949 = vpop.f32.mrf.mxu0
    %950 = vdwg.mxu0
    %v951 = vld [vmem:[#allocation2 + $0x50] sm:$0xff]
    %v952 = vld [vmem:[#allocation2 + $0x58] sm:$0xff]
    %v953 = vld [vmem:[#allocation2 + $0x60] sm:$0xff]
    %v954 = vld [vmem:[#allocation2 + $0x68] sm:$0xff]
    %v955 = vpack.c.bf16 %v952, %v951
    %v956 = vpack.c.bf16 %v954, %v953
    %957 = vmatprep.subr.bf16.mxu0 0
    %958 = vmatpush1.bf16.msra.mxu0 0
    %959 = vmatprep.subr.bf16.mxu0 0
    %960 = vmatpush1.bf16.msra.mxu0 0
    %961 = vmatprep.subr.bf16.mxu0 0
    %962 = vmatpush1.bf16.msra.mxu0 0
    %963 = vmatprep.subr.bf16.mxu0 0
    %964 = vmatpush1.bf16.msra.mxu0 0
    %965 = vmatprep.subr.bf16.mxu0 0
    %966 = vmatpush1.bf16.msra.mxu0 0
    %967 = vmatprep.subr.bf16.mxu0 0
    %968 = vmatpush1.bf16.msra.mxu0 0
    %969 = vmatprep.subr.bf16.mxu0 0
    %970 = vmatpush1.bf16.msra.mxu0 %v956
    %971 = vmatprep.subr.bf16.mxu0 0
    %972 = vmatpush1.bf16.msra.mxu0 %v955
    %973 = vmatprep.subr.bf16.mxu0 0
    %974 = vmatpush2.bf16.msra.mxu0 0
    %975 = vmatprep.subr.bf16.mxu0 0
    %976 = vmatpush2.bf16.msra.mxu0 0
    %977 = vmatprep.subr.bf16.mxu0 0
    %978 = vmatpush2.bf16.msra.mxu0 0
    %979 = vmatprep.subr.bf16.mxu0 0
    %980 = vmatpush2.bf16.msra.mxu0 0
    %981 = vmatprep.subr.bf16.mxu0 0
    %982 = vmatpush2.bf16.msra.mxu0 0
    %983 = vmatprep.subr.bf16.mxu0 0
    %984 = vmatpush2.bf16.msra.mxu0 0
    %985 = vmatprep.subr.bf16.mxu0 0
    %986 = vmatpush2.bf16.msra.mxu0 0
    %987 = vmatprep.subr.bf16.mxu0 0
    %988 = vmatpush2.bf16.msra.mxu0 0
    %989 = vmatprep.mubr.bf16.mxu0 0
    %990 = vmatmul.mubr.bf16.gmra.mxu0 %v124
    %v991 = vpop.f32.mrf.mxu0
    %v992 = vadd.f32 0.0, %v991
    %v993 = vpop.f32.mrf.mxu0
    %v994 = vpop.f32.mrf.mxu0
    %v995 = vpop.f32.mrf.mxu0
    %996 = vdwg.mxu0
    %v997 = vadd.f32 %v943, %v992
    %v998 = vxor.u32 %v997, 2147483648
    %v999 = vmul.f32 %v998, 1.442695
    %v1000 = vpow.pop %v999
    %v1001 = vadd.f32 %v1000, 1.0
    %v1002 = vrcp.pop %v1001
    %v1003 = vmul.f32 1.0, %v1002
    %v1004 = vtanh.pop %v997
    %v1005 = vmul.f32 %v1003, 0.0
    %1007 = vrot.lane.b32.xlu0 %v1004, 64
    %v1008 = vpop.permute.xlu0 %1007
    %v1010 = vmul.f32 %v1003, %v1008
    %1012 = vrot.lane.b32.xlu0 %v1010, 32
    %v1013 = vpop.permute.xlu0 %1012
    %v1015 = vadd.f32 %v1005, %v1013
    %v1016 = vtanh.pop %v1015
    %1018 = vrot.lane.b32.xlu0 %v1016, 64
    %v1019 = vpop.permute.xlu0 %1018
    %v1021 = vmul.f32 %v1003, %v1019
    %v1022 = vpack.c.bf16 %v1021, %v1021
    %1024 = vrot.lane.b32.xlu0 %v1022, 32
    %v1025 = vpop.permute.xlu0 %1024
    %v1027 = vsel %vm122, %v1025, 0
    %1029 = vmatprep.subr.bf16.mxu0 0
    %1030 = vmatpush1.bf16.msra.mxu0 0
    %1031 = vmatprep.subr.bf16.mxu0 0
    %1032 = vmatpush1.bf16.msra.mxu0 0
    %1033 = vmatprep.subr.bf16.mxu0 0
    %1034 = vmatpush1.bf16.msra.mxu0 0
    %1035 = vmatprep.subr.bf16.mxu0 0
    %1036 = vmatpush1.bf16.msra.mxu0 0
    %1037 = vmatprep.subr.bf16.mxu0 0
    %1038 = vmatpush1.bf16.msra.mxu0 0
    %1039 = vmatprep.subr.bf16.mxu0 0
    %1040 = vmatpush1.bf16.msra.mxu0 0
    %1041 = vmatprep.subr.bf16.mxu0 0
    %1042 = vmatpush1.bf16.msra.mxu0 %v956
    %1043 = vmatprep.subr.bf16.mxu0 0
    %1044 = vmatpush1.bf16.msra.mxu0 %v955
    %1045 = vmatprep.subr.bf16.mxu0 0
    %1046 = vmatpush2.bf16.msra.mxu0 0
    %1047 = vmatprep.subr.bf16.mxu0 0
    %1048 = vmatpush2.bf16.msra.mxu0 0
    %1049 = vmatprep.subr.bf16.mxu0 0
    %1050 = vmatpush2.bf16.msra.mxu0 0
    %1051 = vmatprep.subr.bf16.mxu0 0
    %1052 = vmatpush2.bf16.msra.mxu0 0
    %1053 = vmatprep.subr.bf16.mxu0 0
    %1054 = vmatpush2.bf16.msra.mxu0 0
    %1055 = vmatprep.subr.bf16.mxu0 0
    %1056 = vmatpush2.bf16.msra.mxu0 0
    %1057 = vmatprep.subr.bf16.mxu0 0
    %1058 = vmatpush2.bf16.msra.mxu0 0
    %1059 = vmatprep.subr.bf16.mxu0 0
    %1060 = vmatpush2.bf16.msra.mxu0 0
    %1061 = vmatprep.mubr.bf16.mxu0 0
    %1062 = vmatmul.mubr.bf16.gmra.mxu0 %v1027
    %v1063 = vpop.f32.mrf.mxu0
    %v1064 = vadd.f32 0.0, %v1063
    %v1065 = vpop.f32.mrf.mxu0
    %v1066 = vpop.f32.mrf.mxu0
    %v1067 = vpop.f32.mrf.mxu0
    %1068 = vdwg.mxu0
    %v1070 = vrot.slane %v1064, 6
    %v1072 = vadd.f32 %v943, %v1070
    %v1073 = vxor.u32 %v1072, 2147483648
    %v1074 = vmul.f32 %v1073, 1.442695
    %v1075 = vpow.pop %v1074
    %v1076 = vadd.f32 %v1075, 1.0
    %v1077 = vrcp.pop %v1076
    %v1078 = vmul.f32 1.0, %v1077
    %v1079 = vtanh.pop %v1072
    %v1081 = vrot.slane %v1015, 6
    %v1083 = vmul.f32 %v1078, %v1081
    %1085 = vrot.lane.b32.xlu0 %v1079, 64
    %v1086 = vpop.permute.xlu0 %1085
    %v1088 = vmul.f32 %v1078, %v1086
    %1090 = vrot.lane.b32.xlu0 %v1088, 32
    %v1091 = vpop.permute.xlu0 %1090
    %v1093 = vadd.f32 %v1083, %v1091
    %v1094 = vtanh.pop %v1093
    %1096 = vrot.lane.b32.xlu0 %v1094, 64
    %v1097 = vpop.permute.xlu0 %1096
    %v1099 = vmul.f32 %v1078, %v1097
    %v1100 = vpack.c.bf16 %v1099, %v1099
    %v1102 = vrot.slane %v1100, 1
    %1103 = vrot.lane.b32.xlu0 %v1102, 32
    %v1104 = vpop.permute.xlu0 %1103
    %v1106 = vsel %vm122, %v1104, 0
    %1108 = vmatprep.subr.bf16.mxu0 0
    %1109 = vmatpush1.bf16.msra.mxu0 0
    %1110 = vmatprep.subr.bf16.mxu0 0
    %1111 = vmatpush1.bf16.msra.mxu0 0
    %1112 = vmatprep.subr.bf16.mxu0 0
    %1113 = vmatpush1.bf16.msra.mxu0 0
    %1114 = vmatprep.subr.bf16.mxu0 0
    %1115 = vmatpush1.bf16.msra.mxu0 0
    %1116 = vmatprep.subr.bf16.mxu0 0
    %1117 = vmatpush1.bf16.msra.mxu0 0
    %1118 = vmatprep.subr.bf16.mxu0 0
    %1119 = vmatpush1.bf16.msra.mxu0 0
    %1120 = vmatprep.subr.bf16.mxu0 0
    %1121 = vmatpush1.bf16.msra.mxu0 %v956
    %1122 = vmatprep.subr.bf16.mxu0 0
    %1123 = vmatpush1.bf16.msra.mxu0 %v955
    %1124 = vmatprep.subr.bf16.mxu0 0
    %1125 = vmatpush2.bf16.msra.mxu0 0
    %1126 = vmatprep.subr.bf16.mxu0 0
    %1127 = vmatpush2.bf16.msra.mxu0 0
    %1128 = vmatprep.subr.bf16.mxu0 0
    %1129 = vmatpush2.bf16.msra.mxu0 0
    %1130 = vmatprep.subr.bf16.mxu0 0
    %1131 = vmatpush2.bf16.msra.mxu0 0
    %1132 = vmatprep.subr.bf16.mxu0 0
    %1133 = vmatpush2.bf16.msra.mxu0 0
    %1134 = vmatprep.subr.bf16.mxu0 0
    %1135 = vmatpush2.bf16.msra.mxu0 0
    %1136 = vmatprep.subr.bf16.mxu0 0
    %1137 = vmatpush2.bf16.msra.mxu0 0
    %1138 = vmatprep.subr.bf16.mxu0 0
    %1139 = vmatpush2.bf16.msra.mxu0 0
    %1140 = vmatprep.mubr.bf16.mxu0 0
    %1141 = vmatmul.mubr.bf16.gmra.mxu0 %v1106
    %v1142 = vpop.f32.mrf.mxu0
    %v1143 = vadd.f32 0.0, %v1142
    %v1144 = vpop.f32.mrf.mxu0
    %v1145 = vpop.f32.mrf.mxu0
    %v1146 = vpop.f32.mrf.mxu0
    %1147 = vdwg.mxu0
    %v1149 = vrot.slane %v1143, 4
    %v1151 = vadd.f32 %v943, %v1149
    %v1152 = vxor.u32 %v1151, 2147483648
    %v1153 = vmul.f32 %v1152, 1.442695
    %v1154 = vpow.pop %v1153
    %v1155 = vadd.f32 %v1154, 1.0
    %v1156 = vrcp.pop %v1155
    %v1157 = vmul.f32 1.0, %v1156
    %v1158 = vtanh.pop %v1151
    %v1160 = vrot.slane %v1093, 6
    %v1162 = vmul.f32 %v1157, %v1160
    %1164 = vrot.lane.b32.xlu0 %v1158, 64
    %v1165 = vpop.permute.xlu0 %1164
    %v1167 = vmul.f32 %v1157, %v1165
    %1169 = vrot.lane.b32.xlu0 %v1167, 32
    %v1170 = vpop.permute.xlu0 %1169
    %v1172 = vadd.f32 %v1162, %v1170
    %v1173 = vtanh.pop %v1172
    %1175 = vrot.lane.b32.xlu0 %v1173, 64
    %v1176 = vpop.permute.xlu0 %1175
    %v1178 = vmul.f32 %v1157, %v1176
    %v1179 = vpack.c.bf16 %v1178, %v1178
    %v1181 = vrot.slane %v1179, 2
    %1182 = vrot.lane.b32.xlu0 %v1181, 32
    %v1183 = vpop.permute.xlu0 %1182
    %v1185 = vsel %vm122, %v1183, 0
    %1187 = vmatprep.subr.bf16.mxu0 0
    %1188 = vmatpush1.bf16.msra.mxu0 0
    %1189 = vmatprep.subr.bf16.mxu0 0
    %1190 = vmatpush1.bf16.msra.mxu0 0
    %1191 = vmatprep.subr.bf16.mxu0 0
    %1192 = vmatpush1.bf16.msra.mxu0 0
    %1193 = vmatprep.subr.bf16.mxu0 0
    %1194 = vmatpush1.bf16.msra.mxu0 0
    %1195 = vmatprep.subr.bf16.mxu0 0
    %1196 = vmatpush1.bf16.msra.mxu0 0
    %1197 = vmatprep.subr.bf16.mxu0 0
    %1198 = vmatpush1.bf16.msra.mxu0 0
    %1199 = vmatprep.subr.bf16.mxu0 0
    %1200 = vmatpush1.bf16.msra.mxu0 %v956
    %1201 = vmatprep.subr.bf16.mxu0 0
    %1202 = vmatpush1.bf16.msra.mxu0 %v955
    %1203 = vmatprep.subr.bf16.mxu0 0
    %1204 = vmatpush2.bf16.msra.mxu0 0
    %1205 = vmatprep.subr.bf16.mxu0 0
    %1206 = vmatpush2.bf16.msra.mxu0 0
    %1207 = vmatprep.subr.bf16.mxu0 0
    %1208 = vmatpush2.bf16.msra.mxu0 0
    %1209 = vmatprep.subr.bf16.mxu0 0
    %1210 = vmatpush2.bf16.msra.mxu0 0
    %1211 = vmatprep.subr.bf16.mxu0 0
    %1212 = vmatpush2.bf16.msra.mxu0 0
    %1213 = vmatprep.subr.bf16.mxu0 0
    %1214 = vmatpush2.bf16.msra.mxu0 0
    %1215 = vmatprep.subr.bf16.mxu0 0
    %1216 = vmatpush2.bf16.msra.mxu0 0
    %1217 = vmatprep.subr.bf16.mxu0 0
    %1218 = vmatpush2.bf16.msra.mxu0 0
    %1219 = vmatprep.mubr.bf16.mxu0 0
    %1220 = vmatmul.mubr.bf16.gmra.mxu0 %v1185
    %v1221 = vpop.f32.mrf.mxu0
    %v1222 = vadd.f32 0.0, %v1221
    %v1223 = vpop.f32.mrf.mxu0
    %v1224 = vpop.f32.mrf.mxu0
    %v1225 = vpop.f32.mrf.mxu0
    %1226 = vdwg.mxu0
    %v1228 = vrot.slane %v1222, 2
    %v1230 = vadd.f32 %v943, %v1228
    %v1231 = vxor.u32 %v1230, 2147483648
    %v1232 = vmul.f32 %v1231, 1.442695
    %v1233 = vpow.pop %v1232
    %v1234 = vadd.f32 %v1233, 1.0
    %v1235 = vrcp.pop %v1234
    %v1236 = vmul.f32 1.0, %v1235
    %v1237 = vtanh.pop %v1230
    %v1239 = vrot.slane %v1172, 6
    %v1241 = vmul.f32 %v1236, %v1239
    %1243 = vrot.lane.b32.xlu0 %v1237, 64
    %v1244 = vpop.permute.xlu0 %1243
    %v1246 = vmul.f32 %v1236, %v1244
    %1248 = vrot.lane.b32.xlu0 %v1246, 32
    %v1249 = vpop.permute.xlu0 %1248
    %v1251 = vadd.f32 %v1241, %v1249
    %v1252 = vtanh.pop %v1251
    %1254 = vrot.lane.b32.xlu0 %v1252, 64
    %v1255 = vpop.permute.xlu0 %1254
    %v1257 = vmul.f32 %v1236, %v1255
    %v1258 = vpack.c.bf16 %v1257, %v1257
    %v1260 = vrot.slane %v1258, 3
    %1261 = vrot.lane.b32.xlu0 %v1260, 32
    %v1262 = vpop.permute.xlu0 %1261
    %v1264 = vsel %vm122, %v1262, 0
    %1266 = vmatprep.subr.bf16.mxu0 0
    %1267 = vmatpush1.bf16.msra.mxu0 0
    %1268 = vmatprep.subr.bf16.mxu0 0
    %1269 = vmatpush1.bf16.msra.mxu0 0
    %1270 = vmatprep.subr.bf16.mxu0 0
    %1271 = vmatpush1.bf16.msra.mxu0 0
    %1272 = vmatprep.subr.bf16.mxu0 0
    %1273 = vmatpush1.bf16.msra.mxu0 0
    %1274 = vmatprep.subr.bf16.mxu0 0
    %1275 = vmatpush1.bf16.msra.mxu0 0
    %1276 = vmatprep.subr.bf16.mxu0 0
    %1277 = vmatpush1.bf16.msra.mxu0 0
    %1278 = vmatprep.subr.bf16.mxu0 0
    %1279 = vmatpush1.bf16.msra.mxu0 %v956
    %1280 = vmatprep.subr.bf16.mxu0 0
    %1281 = vmatpush1.bf16.msra.mxu0 %v955
    %1282 = vmatprep.subr.bf16.mxu0 0
    %1283 = vmatpush2.bf16.msra.mxu0 0
    %1284 = vmatprep.subr.bf16.mxu0 0
    %1285 = vmatpush2.bf16.msra.mxu0 0
    %1286 = vmatprep.subr.bf16.mxu0 0
    %1287 = vmatpush2.bf16.msra.mxu0 0
    %1288 = vmatprep.subr.bf16.mxu0 0
    %1289 = vmatpush2.bf16.msra.mxu0 0
    %1290 = vmatprep.subr.bf16.mxu0 0
    %1291 = vmatpush2.bf16.msra.mxu0 0
    %1292 = vmatprep.subr.bf16.mxu0 0
    %1293 = vmatpush2.bf16.msra.mxu0 0
    %1294 = vmatprep.subr.bf16.mxu0 0
    %1295 = vmatpush2.bf16.msra.mxu0 0
    %1296 = vmatprep.subr.bf16.mxu0 0
    %1297 = vmatpush2.bf16.msra.mxu0 0
    %1298 = vmatprep.mubr.bf16.mxu0 0
    %1299 = vmatmul.mubr.bf16.gmra.mxu0 %v1264
    %v1300 = vpop.f32.mrf.mxu0
    %v1301 = vadd.f32 0.0, %v1300
    %v1302 = vpop.f32.mrf.mxu0
    %v1303 = vpop.f32.mrf.mxu0
    %v1304 = vpop.f32.mrf.mxu0
    %1305 = vdwg.mxu0
    %v1306 = vadd.f32 %v948, %v1301
    %v1307 = vxor.u32 %v1306, 2147483648
    %v1308 = vmul.f32 %v1307, 1.442695
    %v1309 = vpow.pop %v1308
    %v1310 = vadd.f32 %v1309, 1.0
    %v1311 = vrcp.pop %v1310
    %v1312 = vmul.f32 1.0, %v1311
    %v1313 = vtanh.pop %v1306
    %v1315 = vrot.slane %v1251, 6
    %v1317 = vmul.f32 %v1312, %v1315
    %1319 = vrot.lane.b32.xlu0 %v1313, 64
    %v1320 = vpop.permute.xlu0 %1319
    %v1322 = vmul.f32 %v1312, %v1320
    %1324 = vrot.lane.b32.xlu0 %v1322, 32
    %v1325 = vpop.permute.xlu0 %1324
    %v1327 = vadd.f32 %v1317, %v1325
    %v1328 = vtanh.pop %v1327
    %1330 = vrot.lane.b32.xlu0 %v1328, 64
    %v1331 = vpop.permute.xlu0 %1330
    %v1333 = vmul.f32 %v1312, %v1331
    %v1334 = vpack.c.bf16 %v1333, %v1333
    %1336 = vrot.lane.b32.xlu0 %v1334, 32
    %v1337 = vpop.permute.xlu0 %1336
    %v1339 = vsel %vm122, %v1337, 0
    %1341 = vmatprep.subr.bf16.mxu0 0
    %1342 = vmatpush1.bf16.msra.mxu0 0
    %1343 = vmatprep.subr.bf16.mxu0 0
    %1344 = vmatpush1.bf16.msra.mxu0 0
    %1345 = vmatprep.subr.bf16.mxu0 0
    %1346 = vmatpush1.bf16.msra.mxu0 0
    %1347 = vmatprep.subr.bf16.mxu0 0
    %1348 = vmatpush1.bf16.msra.mxu0 0
    %1349 = vmatprep.subr.bf16.mxu0 0
    %1350 = vmatpush1.bf16.msra.mxu0 0
    %1351 = vmatprep.subr.bf16.mxu0 0
    %1352 = vmatpush1.bf16.msra.mxu0 0
    %1353 = vmatprep.subr.bf16.mxu0 0
    %1354 = vmatpush1.bf16.msra.mxu0 %v956
    %1355 = vmatprep.subr.bf16.mxu0 0
    %1356 = vmatpush1.bf16.msra.mxu0 %v955
    %1357 = vmatprep.subr.bf16.mxu0 0
    %1358 = vmatpush2.bf16.msra.mxu0 0
    %1359 = vmatprep.subr.bf16.mxu0 0
    %1360 = vmatpush2.bf16.msra.mxu0 0
    %1361 = vmatprep.subr.bf16.mxu0 0
    %1362 = vmatpush2.bf16.msra.mxu0 0
    %1363 = vmatprep.subr.bf16.mxu0 0
    %1364 = vmatpush2.bf16.msra.mxu0 0
    %1365 = vmatprep.subr.bf16.mxu0 0
    %1366 = vmatpush2.bf16.msra.mxu0 0
    %1367 = vmatprep.subr.bf16.mxu0 0
    %1368 = vmatpush2.bf16.msra.mxu0 0
    %1369 = vmatprep.subr.bf16.mxu0 0
    %1370 = vmatpush2.bf16.msra.mxu0 0
    %1371 = vmatprep.subr.bf16.mxu0 0
    %1372 = vmatpush2.bf16.msra.mxu0 0
    %1373 = vmatprep.mubr.bf16.mxu0 0
    %1374 = vmatmul.mubr.bf16.gmra.mxu0 %v1339
    %v1375 = vpop.f32.mrf.mxu0
    %v1376 = vadd.f32 0.0, %v1375
    %v1377 = vpop.f32.mrf.mxu0
    %v1378 = vpop.f32.mrf.mxu0
    %v1379 = vpop.f32.mrf.mxu0
    %1380 = vdwg.mxu0
    %v1382 = vrot.slane %v1376, 6
    %v1384 = vadd.f32 %v948, %v1382
    %v1385 = vxor.u32 %v1384, 2147483648
    %v1386 = vmul.f32 %v1385, 1.442695
    %v1387 = vpow.pop %v1386
    %v1388 = vadd.f32 %v1387, 1.0
    %v1389 = vrcp.pop %v1388
    %v1390 = vmul.f32 1.0, %v1389
    %v1391 = vtanh.pop %v1384
    %v1393 = vrot.slane %v1327, 6
    %v1395 = vmul.f32 %v1390, %v1393
    %1397 = vrot.lane.b32.xlu0 %v1391, 64
    %v1398 = vpop.permute.xlu0 %1397
    %v1400 = vmul.f32 %v1390, %v1398
    %1402 = vrot.lane.b32.xlu0 %v1400, 32
    %v1403 = vpop.permute.xlu0 %1402
    %v1405 = vadd.f32 %v1395, %v1403
    %v1406 = vtanh.pop %v1405
    %1408 = vrot.lane.b32.xlu0 %v1406, 64
    %v1409 = vpop.permute.xlu0 %1408
    %v1411 = vmul.f32 %v1390, %v1409
    %v1412 = vpack.c.bf16 %v1411, %v1411
    %v1414 = vrot.slane %v1412, 1
    %1415 = vrot.lane.b32.xlu0 %v1414, 32
    %v1416 = vpop.permute.xlu0 %1415
    %v1418 = vsel %vm122, %v1416, 0
    %1420 = vmatprep.subr.bf16.mxu0 0
    %1421 = vmatpush1.bf16.msra.mxu0 0
    %1422 = vmatprep.subr.bf16.mxu0 0
    %1423 = vmatpush1.bf16.msra.mxu0 0
    %1424 = vmatprep.subr.bf16.mxu0 0
    %1425 = vmatpush1.bf16.msra.mxu0 0
    %1426 = vmatprep.subr.bf16.mxu0 0
    %1427 = vmatpush1.bf16.msra.mxu0 0
    %1428 = vmatprep.subr.bf16.mxu0 0
    %1429 = vmatpush1.bf16.msra.mxu0 0
    %1430 = vmatprep.subr.bf16.mxu0 0
    %1431 = vmatpush1.bf16.msra.mxu0 0
    %1432 = vmatprep.subr.bf16.mxu0 0
    %1433 = vmatpush1.bf16.msra.mxu0 %v956
    %1434 = vmatprep.subr.bf16.mxu0 0
    %1435 = vmatpush1.bf16.msra.mxu0 %v955
    %1436 = vmatprep.subr.bf16.mxu0 0
    %1437 = vmatpush2.bf16.msra.mxu0 0
    %1438 = vmatprep.subr.bf16.mxu0 0
    %1439 = vmatpush2.bf16.msra.mxu0 0
    %1440 = vmatprep.subr.bf16.mxu0 0
    %1441 = vmatpush2.bf16.msra.mxu0 0
    %1442 = vmatprep.subr.bf16.mxu0 0
    %1443 = vmatpush2.bf16.msra.mxu0 0
    %1444 = vmatprep.subr.bf16.mxu0 0
    %1445 = vmatpush2.bf16.msra.mxu0 0
    %1446 = vmatprep.subr.bf16.mxu0 0
    %1447 = vmatpush2.bf16.msra.mxu0 0
    %1448 = vmatprep.subr.bf16.mxu0 0
    %1449 = vmatpush2.bf16.msra.mxu0 0
    %1450 = vmatprep.subr.bf16.mxu0 0
    %1451 = vmatpush2.bf16.msra.mxu0 0
    %1452 = vmatprep.mubr.bf16.mxu0 0
    %1453 = vmatmul.mubr.bf16.gmra.mxu0 %v1418
    %v1454 = vpop.f32.mrf.mxu0
    %v1455 = vadd.f32 0.0, %v1454
    %v1456 = vpop.f32.mrf.mxu0
    %v1457 = vpop.f32.mrf.mxu0
    %v1458 = vpop.f32.mrf.mxu0
    %1459 = vdwg.mxu0
    %v1461 = vrot.slane %v1455, 4
    %v1463 = vadd.f32 %v948, %v1461
    %v1464 = vxor.u32 %v1463, 2147483648
    %v1465 = vmul.f32 %v1464, 1.442695
    %v1466 = vpow.pop %v1465
    %v1467 = vadd.f32 %v1466, 1.0
    %v1468 = vrcp.pop %v1467
    %v1469 = vmul.f32 1.0, %v1468
    %v1470 = vtanh.pop %v1463
    %v1472 = vrot.slane %v1405, 6
    %v1474 = vmul.f32 %v1469, %v1472
    %1476 = vrot.lane.b32.xlu0 %v1470, 64
    %v1477 = vpop.permute.xlu0 %1476
    %v1479 = vmul.f32 %v1469, %v1477
    %1481 = vrot.lane.b32.xlu0 %v1479, 32
    %v1482 = vpop.permute.xlu0 %1481
    %v1484 = vadd.f32 %v1474, %v1482
    %v1485 = vtanh.pop %v1484
    %1487 = vrot.lane.b32.xlu0 %v1485, 64
    %v1488 = vpop.permute.xlu0 %1487
    %v1490 = vmul.f32 %v1469, %v1488
    %v1491 = vpack.c.bf16 %v1490, %v1490
    %v1493 = vrot.slane %v1491, 2
    %1494 = vrot.lane.b32.xlu0 %v1493, 32
    %v1495 = vpop.permute.xlu0 %1494
    %v1497 = vsel %vm122, %v1495, 0
    %1499 = vmatprep.subr.bf16.mxu0 0
    %1500 = vmatpush1.bf16.msra.mxu0 0
    %1501 = vmatprep.subr.bf16.mxu0 0
    %1502 = vmatpush1.bf16.msra.mxu0 0
    %1503 = vmatprep.subr.bf16.mxu0 0
    %1504 = vmatpush1.bf16.msra.mxu0 0
    %1505 = vmatprep.subr.bf16.mxu0 0
    %1506 = vmatpush1.bf16.msra.mxu0 0
    %1507 = vmatprep.subr.bf16.mxu0 0
    %1508 = vmatpush1.bf16.msra.mxu0 0
    %1509 = vmatprep.subr.bf16.mxu0 0
    %1510 = vmatpush1.bf16.msra.mxu0 0
    %1511 = vmatprep.subr.bf16.mxu0 0
    %1512 = vmatpush1.bf16.msra.mxu0 %v956
    %1513 = vmatprep.subr.bf16.mxu0 0
    %1514 = vmatpush1.bf16.msra.mxu0 %v955
    %1515 = vmatprep.subr.bf16.mxu0 0
    %1516 = vmatpush2.bf16.msra.mxu0 0
    %1517 = vmatprep.subr.bf16.mxu0 0
    %1518 = vmatpush2.bf16.msra.mxu0 0
    %1519 = vmatprep.subr.bf16.mxu0 0
    %1520 = vmatpush2.bf16.msra.mxu0 0
    %1521 = vmatprep.subr.bf16.mxu0 0
    %1522 = vmatpush2.bf16.msra.mxu0 0
    %1523 = vmatprep.subr.bf16.mxu0 0
    %1524 = vmatpush2.bf16.msra.mxu0 0
    %1525 = vmatprep.subr.bf16.mxu0 0
    %1526 = vmatpush2.bf16.msra.mxu0 0
    %1527 = vmatprep.subr.bf16.mxu0 0
    %1528 = vmatpush2.bf16.msra.mxu0 0
    %1529 = vmatprep.subr.bf16.mxu0 0
    %1530 = vmatpush2.bf16.msra.mxu0 0
    %1531 = vmatprep.mubr.bf16.mxu0 0
    %1532 = vmatmul.mubr.bf16.gmra.mxu0 %v1497
    %v1533 = vpop.f32.mrf.mxu0
    %v1534 = vadd.f32 0.0, %v1533
    %v1535 = vpop.f32.mrf.mxu0
    %v1536 = vpop.f32.mrf.mxu0
    %v1537 = vpop.f32.mrf.mxu0
    %1538 = vdwg.mxu0
    %v1540 = vrot.slane %v1534, 2
    %v1542 = vadd.f32 %v948, %v1540
    %v1543 = vxor.u32 %v1542, 2147483648
    %v1544 = vmul.f32 %v1543, 1.442695
    %v1545 = vpow.pop %v1544
    %v1546 = vadd.f32 %v1545, 1.0
    %v1547 = vrcp.pop %v1546
    %v1548 = vmul.f32 1.0, %v1547
    %v1549 = vtanh.pop %v1542
    %v1551 = vrot.slane %v1484, 6
    %v1553 = vmul.f32 %v1548, %v1551
    %1555 = vrot.lane.b32.xlu0 %v1549, 64
    %v1556 = vpop.permute.xlu0 %1555
    %v1558 = vmul.f32 %v1548, %v1556
    %1560 = vrot.lane.b32.xlu0 %v1558, 32
    %v1561 = vpop.permute.xlu0 %1560
    %v1563 = vadd.f32 %v1553, %v1561
    %v1564 = vtanh.pop %v1563
    %1566 = vrot.lane.b32.xlu0 %v1564, 64
    %v1567 = vpop.permute.xlu0 %1566
    %v1569 = vmul.f32 %v1548, %v1567
    %v1571 = vrot.slane %v1099, 2
    %v1574 = vrot.slane %v1178, 4
    %v1577 = vrot.slane %v1257, 6
    %v1580 = vrot.slane %v1411, 2
    %v1583 = vrot.slane %v1490, 4
    %v1586 = vrot.slane %v1569, 6
    %v1588 = vld [vmem:[#allocation2 + $0x78] sm:$0x1]
    %v1589 = vld [vmem:[#allocation2 + $0x79] sm:$0x1]
    %v1590 = vlaneseq
    %v1591 = vshrl.u32 %v1590, 7
    %v1592 = vsub.s32 0, %v1591
    %v1593 = vrot.slane %v1588, %v1592
    %1595 = vrot.lane.b32.xlu0 %v1593, 96
    %v1596 = vpop.permute.xlu0 %1595
    %v1598 = vmul.f32 %v1021, %v1596
    %v1599 = vmul.f32 %v1571, %v1596
    %v1600 = vmul.f32 %v1574, %v1596
    %v1601 = vmul.f32 %v1577, %v1596
    %v1602 = vmul.f32 %v1333, %v1596
    %v1603 = vmul.f32 %v1580, %v1596
    %v1604 = vmul.f32 %v1583, %v1596
    %v1605 = vmul.f32 %v1586, %v1596
    %1614 = vrot.lane.b32.xlu0 %v1598, 32
    %v1615 = vpop.permute.xlu0 %1614
    %1616 = vrot.lane.b32.xlu0 %v1599, 32
    %v1617 = vpop.permute.xlu0 %1616
    %1618 = vrot.lane.b32.xlu0 %v1600, 32
    %v1619 = vpop.permute.xlu0 %1618
    %1620 = vrot.lane.b32.xlu0 %v1601, 32
    %v1621 = vpop.permute.xlu0 %1620
    %1622 = vrot.lane.b32.xlu0 %v1602, 32
    %v1623 = vpop.permute.xlu0 %1622
    %1624 = vrot.lane.b32.xlu0 %v1603, 32
    %v1625 = vpop.permute.xlu0 %1624
    %1626 = vrot.lane.b32.xlu0 %v1604, 32
    %v1627 = vpop.permute.xlu0 %1626
    %1628 = vrot.lane.b32.xlu0 %v1605, 32
    %v1629 = vpop.permute.xlu0 %1628
    %vm1638 = vcmask 254976
    %v1639 = vsel %vm1638, %v1615, 0.0
    %1640 = vadd.xlane.f32.xlu0 %v1639
    %v1641 = vpop.xlane.xlu0 %1640
    %v1642 = vsel %vm1638, %v1617, 0.0
    %1643 = vadd.xlane.f32.xlu0 %v1642
    %v1644 = vpop.xlane.xlu0 %1643
    %v1645 = vsel %vm1638, %v1619, 0.0
    %1646 = vadd.xlane.f32.xlu0 %v1645
    %v1647 = vpop.xlane.xlu0 %1646
    %v1648 = vsel %vm1638, %v1621, 0.0
    %1649 = vadd.xlane.f32.xlu0 %v1648
    %v1650 = vpop.xlane.xlu0 %1649
    %v1651 = vsel %vm1638, %v1623, 0.0
    %1652 = vadd.xlane.f32.xlu0 %v1651
    %v1653 = vpop.xlane.xlu0 %1652
    %v1654 = vsel %vm1638, %v1625, 0.0
    %1655 = vadd.xlane.f32.xlu0 %v1654
    %v1656 = vpop.xlane.xlu0 %1655
    %v1657 = vsel %vm1638, %v1627, 0.0
    %1658 = vadd.xlane.f32.xlu0 %v1657
    %v1659 = vpop.xlane.xlu0 %1658
    %v1660 = vsel %vm1638, %v1629, 0.0
    %1661 = vadd.xlane.f32.xlu0 %v1660
    %v1662 = vpop.xlane.xlu0 %1661
    %v1663 = vlaneseq
    %v1664 = vshrl.u32 %v1663, 7
    %v1665 = vsub.s32 0, %v1664
    %v1666 = vrot.slane %v1589, %v1665
    %v1667 = vadd.f32 %v1641, %v1666
    %v1668 = vadd.f32 %v1644, %v1666
    %v1669 = vadd.f32 %v1647, %v1666
    %v1670 = vadd.f32 %v1650, %v1666
    %v1671 = vadd.f32 %v1653, %v1666
    %v1672 = vadd.f32 %v1656, %v1666
    %v1673 = vadd.f32 %v1659, %v1666
    %v1674 = vadd.f32 %v1662, %v1666
    %vm1675 = vcmask 1024
    %1676 = vst.msk [vmem:[%s2] sm:$0x3] %vm1675, %v1667
    %1677 = vst.msk [vmem:[%s2 + $0x2] sm:$0x3] %vm1675, %v1668
    %1678 = vst.msk [vmem:[%s2 + $0x4] sm:$0x3] %vm1675, %v1669
    %1679 = vst.msk [vmem:[%s2 + $0x6] sm:$0x3] %vm1675, %v1670
    %1680 = vst.msk [vmem:[%s2 + $0x8] sm:$0x3] %vm1675, %v1671
    %1681 = vst.msk [vmem:[%s2 + $0xa] sm:$0x3] %vm1675, %v1672
    %1682 = vst.msk [vmem:[%s2 + $0xc] sm:$0x3] %vm1675, %v1673
    %1683 = vst.msk [vmem:[%s2 + $0xe] sm:$0x3] %vm1675, %v1674
    // Predicated region
    $region14: #{tpu_custom_call.1} parent=1 // pred_check
      _
    $region15: #{tpu_custom_call.1} parent=1 // pred_check_branch
      %1685 = sbr.rel (0) target = $region17
    $region16: #{tpu_custom_call.1} parent=1 // pred_region
      _
    $region17: #{tpu_custom_call.1} parent=1 // pred_fallthru
      _
    // Predicated region
    $region18: #{tpu_custom_call.1} parent=1 // pred_check
      _
    $region19: #{tpu_custom_call.1} parent=1 // pred_check_branch
      %1687 = sbr.rel (0) target = $region21
    $region20: #{tpu_custom_call.1} parent=1 // pred_region
      _
    $region21: #{tpu_custom_call.1} parent=1 // pred_fallthru
      _
    %1688 = vsyncpa [#allocation3], 1

</llo_original>
